<compile_context>
chip_gen: v6e
topology: v6e:2x2x1
jax: 0.10.0
libtpu: 0.0.40
codegen_flags: <defaults>
</compile_context>

<pallas_src>
import functools
import math

import jax
import jax.numpy as jnp
from jax.experimental import pallas as pl
from jax.experimental.pallas import tpu as pltpu


def _layer_norm(y, g, b, eps=1e-5):
    mu = jnp.mean(y, axis=-1, keepdims=True)
    var = jnp.mean((y - mu) ** 2, axis=-1, keepdims=True)
    return (y - mu) * jax.lax.rsqrt(var + eps) * g + b


def ut_encoder_kernel(x_ref,
                      wq_ref, wk_ref, wv_ref, bq_ref, bk_ref, bv_ref,
                      wo_ref, bo_ref,
                      ln1_g_ref, ln1_b_ref,
                      w1_ref, b1_ref, w2_ref, b2_ref,
                      ln2_g_ref, ln2_b_ref,
                      o_ref,
                      *, n_layers, n_heads, batch, seq):
    N, H = x_ref.shape                      # N = B * T  (whole batch, one tile)
    F = w1_ref.shape[1]
    hd = H // n_heads
    scale = 1.0 / math.sqrt(hd)
    bf16 = jnp.bfloat16

    x0 = x_ref[...]                         # (N, H) f32

    # bf16 weights (already bf16 in VMEM) — MXU fast path.
    wq = wq_ref[...]; wk = wk_ref[...]; wv = wv_ref[...]; wo = wo_ref[...]
    w1 = w1_ref[...]; w2 = w2_ref[...]

    # Hoisted f32 broadcasts (done once; the layer loop adds full-size tensors).
    bq = jnp.broadcast_to(bq_ref[...], (N, H))
    bk = jnp.broadcast_to(bk_ref[...], (N, H))
    bv = jnp.broadcast_to(bv_ref[...], (N, H))
    bo = jnp.broadcast_to(bo_ref[...], (N, H))
    b1 = jnp.broadcast_to(b1_ref[...], (N, F))
    b2 = jnp.broadcast_to(b2_ref[...], (N, H))
    g1 = jnp.broadcast_to(ln1_g_ref[...], (N, H))
    be1 = jnp.broadcast_to(ln1_b_ref[...], (N, H))
    g2 = jnp.broadcast_to(ln2_g_ref[...], (N, H))
    be2 = jnp.broadcast_to(ln2_b_ref[...], (N, H))

    def split_heads(t2d):
        # (B*T, H) -> (B*NH, T, hd), batch index n = b*NH + h (contiguous head
        # chunks of the lane axis, matching PyTorch MultiheadAttention).
        chunks = []
        for b in range(batch):
            for h in range(n_heads):
                chunks.append(t2d[b * seq:(b + 1) * seq, h * hd:(h + 1) * hd])
        return jnp.stack(chunks, axis=0)

    def merge_heads(t3d):
        # (B*NH, T, hd) -> (B*T, H)
        rows = []
        for b in range(batch):
            heads = [t3d[b * n_heads + h] for h in range(n_heads)]
            rows.append(jnp.concatenate(heads, axis=-1))      # (T, H)
        return jnp.concatenate(rows, axis=0)                  # (B*T, H)

    def layer(_, x):
        xb = x.astype(bf16)
        # --- QKV projections over all B*T rows at once ---
        q = jnp.dot(xb, wq, preferred_element_type=jnp.float32) + bq
        k = jnp.dot(xb, wk, preferred_element_type=jnp.float32) + bk
        v = jnp.dot(xb, wv, preferred_element_type=jnp.float32) + bv

        qh = split_heads(q).astype(bf16)                      # (B*NH, T, hd)
        kh = split_heads(k).astype(bf16)
        vh = split_heads(v).astype(bf16)

        # --- batched multi-head attention (single einsum per matmul) ---
        s = jnp.einsum('nqd,nkd->nqk', qh, kh,
                       preferred_element_type=jnp.float32) * scale
        s = s - jnp.max(s, axis=-1, keepdims=True)
        p = jnp.exp(s)
        p = p * pl.reciprocal(jnp.sum(p, axis=-1, keepdims=True), approx=True)
        ah = jnp.einsum('nqk,nkd->nqd', p.astype(bf16), vh,
                        preferred_element_type=jnp.float32)   # (B*NH, T, hd)

        attn = merge_heads(ah)                                # (B*T, H) f32
        attn = jnp.dot(attn.astype(bf16), wo,
                       preferred_element_type=jnp.float32) + bo

        # --- add & norm (post-norm, PyTorch default norm_first=False) ---
        y = _layer_norm(x + attn, g1, be1)

        # --- feed forward: Linear -> ReLU -> Linear ---
        h1 = jnp.maximum(
            jnp.dot(y.astype(bf16), w1, preferred_element_type=jnp.float32) + b1,
            0.0)
        ff = jnp.dot(h1.astype(bf16), w2,
                     preferred_element_type=jnp.float32) + b2

        # --- add & norm ---
        return _layer_norm(y + ff, g2, be2)

    # Universal Transformer: same layer weights re-applied n_layers times.
    x_out = jax.lax.fori_loop(0, n_layers, layer, x0)
    o_ref[...] = x_out


def encoder_t_forward(input_seqs, params, *, n_layers, n_heads):
    """input_seqs: int32 (B, T) token indices.  Returns float32 (B, T, H)."""
    # Embedding lookup: data-dependent gather, done in plain JAX (glue).
    embedded = jnp.take(params["emb"], input_seqs, axis=0)    # (B, T, H) f32
    B, T, H = embedded.shape
    F = params["w1"].shape[1]
    N = B * T
    x2d = embedded.reshape(N, H)                              # fold batch into M

    bf = jnp.bfloat16
    wq = params["wq"].astype(bf); wk = params["wk"].astype(bf)
    wv = params["wv"].astype(bf); wo = params["wo"].astype(bf)
    w1 = params["w1"].astype(bf); w2 = params["w2"].astype(bf)

    def full(shape):
        return pl.BlockSpec(shape, lambda i, _s=shape: tuple(0 for _ in _s))

    in_specs = [
        full((N, H)),                                   # x (B*T, H)
        full((H, H)), full((H, H)), full((H, H)),       # wq wk wv  (bf16)
        full((1, H)), full((1, H)), full((1, H)),       # bq bk bv  (f32)
        full((H, H)), full((1, H)),                     # wo bo
        full((1, H)), full((1, H)),                     # ln1 gamma/beta
        full((H, F)), full((1, F)),                     # w1 b1
        full((F, H)), full((1, H)),                     # w2 b2
        full((1, H)), full((1, H)),                     # ln2 gamma/beta
    ]

    kernel = functools.partial(ut_encoder_kernel,
                               n_layers=n_layers, n_heads=n_heads,
                               batch=B, seq=T)

    out2d = pl.pallas_call(
        kernel,
        out_shape=jax.ShapeDtypeStruct((N, H), jnp.float32),
        grid=(1,),
        in_specs=in_specs,
        out_specs=full((N, H)),
        compiler_params=pltpu.CompilerParams(
            dimension_semantics=("arbitrary",)),
    )(x2d,
      wq, wk, wv,
      params["bq"], params["bk"], params["bv"],
      wo, params["bo"],
      params["ln1_g"], params["ln1_b"],
      w1, params["b1"], w2, params["b2"],
      params["ln2_g"], params["ln2_b"])

    return out2d.reshape(B, T, H)


def make_params(key, vocab, hidden, feed):
    ks = jax.random.split(key, 10)
    s = 0.1
    return {
        "emb": jax.random.normal(ks[0], (vocab, hidden), jnp.float32) * s,
        "wq": jax.random.normal(ks[1], (hidden, hidden), jnp.float32) * s,
        "wk": jax.random.normal(ks[2], (hidden, hidden), jnp.float32) * s,
        "wv": jax.random.normal(ks[3], (hidden, hidden), jnp.float32) * s,
        "bq": jnp.zeros((1, hidden), jnp.float32),
        "bk": jnp.zeros((1, hidden), jnp.float32),
        "bv": jnp.zeros((1, hidden), jnp.float32),
        "wo": jax.random.normal(ks[4], (hidden, hidden), jnp.float32) * s,
        "bo": jnp.zeros((1, hidden), jnp.float32),
        "ln1_g": jnp.ones((1, hidden), jnp.float32),
        "ln1_b": jnp.zeros((1, hidden), jnp.float32),
        "w1": jax.random.normal(ks[5], (hidden, feed), jnp.float32) * s,
        "b1": jnp.zeros((1, feed), jnp.float32),
        "w2": jax.random.normal(ks[6], (feed, hidden), jnp.float32) * s,
        "b2": jnp.zeros((1, hidden), jnp.float32),
        "ln2_g": jnp.ones((1, hidden), jnp.float32),
        "ln2_b": jnp.zeros((1, hidden), jnp.float32),
    }


if __name__ == "__main__":
    # Small shapes consistent with the module's forward.
    B, T = 2, 8
    vocab, hidden, attn_head, feed, n_layers = 50, 32, 4, 64, 2
    # dropout=0.1 in the module; eval semantics -> dropout is a no-op here.

    key = jax.random.PRNGKey(0)
    k_param, k_tok = jax.random.split(key)
    params = make_params(k_param, vocab, hidden, feed)
    input_seqs = jax.random.randint(k_tok, (B, T), 0, vocab, dtype=jnp.int32)

    out = encoder_t_forward(input_seqs, params,
                            n_layers=n_layers, n_heads=attn_head)
    out = jax.block_until_ready(out)
    assert out.shape == (B, T, hidden) and out.dtype == jnp.float32
    assert bool(jnp.all(jnp.isfinite(out)))
    print("KERNEL_OK")
</pallas_src>

<mosaic_0001>
module attributes {stable_mosaic.version = 11 : i64} {
  func.func @ut_encoder_kernel(%arg0: i32, %arg1: memref<16x32xf32, #tpu.memory_space<vmem>>, %arg2: memref<32x32xbf16, #tpu.memory_space<vmem>>, %arg3: memref<32x32xbf16, #tpu.memory_space<vmem>>, %arg4: memref<32x32xbf16, #tpu.memory_space<vmem>>, %arg5: memref<1x32xf32, #tpu.memory_space<vmem>>, %arg6: memref<1x32xf32, #tpu.memory_space<vmem>>, %arg7: memref<1x32xf32, #tpu.memory_space<vmem>>, %arg8: memref<32x32xbf16, #tpu.memory_space<vmem>>, %arg9: memref<1x32xf32, #tpu.memory_space<vmem>>, %arg10: memref<1x32xf32, #tpu.memory_space<vmem>>, %arg11: memref<1x32xf32, #tpu.memory_space<vmem>>, %arg12: memref<32x64xbf16, #tpu.memory_space<vmem>>, %arg13: memref<1x64xf32, #tpu.memory_space<vmem>>, %arg14: memref<64x32xbf16, #tpu.memory_space<vmem>>, %arg15: memref<1x32xf32, #tpu.memory_space<vmem>>, %arg16: memref<1x32xf32, #tpu.memory_space<vmem>>, %arg17: memref<1x32xf32, #tpu.memory_space<vmem>>, %arg18: memref<16x32xf32, #tpu.memory_space<vmem>>) attributes {dimension_semantics = [#tpu.dimension_semantics<arbitrary>], iteration_bounds = array<i64: 1>, scalar_prefetch = 0 : i64, scratch_operands = 0 : i64, tpu.core_type = #tpu.core_type<tc>, window_params = [{pipeline_mode = #tpu.pipeline_mode<synchronous>, transform_indices = @transform_0, window_bounds = array<i64: 16, 32>}, {pipeline_mode = #tpu.pipeline_mode<synchronous>, transform_indices = @transform_1, window_bounds = array<i64: 32, 32>}, {pipeline_mode = #tpu.pipeline_mode<synchronous>, transform_indices = @transform_2, window_bounds = array<i64: 32, 32>}, {pipeline_mode = #tpu.pipeline_mode<synchronous>, transform_indices = @transform_3, window_bounds = array<i64: 32, 32>}, {pipeline_mode = #tpu.pipeline_mode<synchronous>, transform_indices = @transform_4, window_bounds = array<i64: 1, 32>}, {pipeline_mode = #tpu.pipeline_mode<synchronous>, transform_indices = @transform_5, window_bounds = array<i64: 1, 32>}, {pipeline_mode = #tpu.pipeline_mode<synchronous>, transform_indices = @transform_6, window_bounds = array<i64: 1, 32>}, {pipeline_mode = #tpu.pipeline_mode<synchronous>, transform_indices = @transform_7, window_bounds = array<i64: 32, 32>}, {pipeline_mode = #tpu.pipeline_mode<synchronous>, transform_indices = @transform_8, window_bounds = array<i64: 1, 32>}, {pipeline_mode = #tpu.pipeline_mode<synchronous>, transform_indices = @transform_9, window_bounds = array<i64: 1, 32>}, {pipeline_mode = #tpu.pipeline_mode<synchronous>, transform_indices = @transform_10, window_bounds = array<i64: 1, 32>}, {pipeline_mode = #tpu.pipeline_mode<synchronous>, transform_indices = @transform_11, window_bounds = array<i64: 32, 64>}, {pipeline_mode = #tpu.pipeline_mode<synchronous>, transform_indices = @transform_12, window_bounds = array<i64: 1, 64>}, {pipeline_mode = #tpu.pipeline_mode<synchronous>, transform_indices = @transform_13, window_bounds = array<i64: 64, 32>}, {pipeline_mode = #tpu.pipeline_mode<synchronous>, transform_indices = @transform_14, window_bounds = array<i64: 1, 32>}, {pipeline_mode = #tpu.pipeline_mode<synchronous>, transform_indices = @transform_15, window_bounds = array<i64: 1, 32>}, {pipeline_mode = #tpu.pipeline_mode<synchronous>, transform_indices = @transform_16, window_bounds = array<i64: 1, 32>}, {pipeline_mode = #tpu.pipeline_mode<synchronous>, transform_indices = @transform_17, window_bounds = array<i64: 16, 32>}]} {
    %c0 = arith.constant 0 : index
    %c0_0 = arith.constant 0 : index
    %0 = vector.load %arg1[%c0, %c0_0] : memref<16x32xf32, #tpu.memory_space<vmem>>, vector<16x32xf32>
    %c0_1 = arith.constant 0 : index
    %c0_2 = arith.constant 0 : index
    %1 = vector.load %arg2[%c0_1, %c0_2] : memref<32x32xbf16, #tpu.memory_space<vmem>>, vector<32x32xbf16>
    %c0_3 = arith.constant 0 : index
    %c0_4 = arith.constant 0 : index
    %2 = vector.load %arg3[%c0_3, %c0_4] : memref<32x32xbf16, #tpu.memory_space<vmem>>, vector<32x32xbf16>
    %c0_5 = arith.constant 0 : index
    %c0_6 = arith.constant 0 : index
    %3 = vector.load %arg4[%c0_5, %c0_6] : memref<32x32xbf16, #tpu.memory_space<vmem>>, vector<32x32xbf16>
    %c0_7 = arith.constant 0 : index
    %c0_8 = arith.constant 0 : index
    %4 = vector.load %arg8[%c0_7, %c0_8] : memref<32x32xbf16, #tpu.memory_space<vmem>>, vector<32x32xbf16>
    %c0_9 = arith.constant 0 : index
    %c0_10 = arith.constant 0 : index
    %5 = vector.load %arg12[%c0_9, %c0_10] : memref<32x64xbf16, #tpu.memory_space<vmem>>, vector<32x64xbf16>
    %c0_11 = arith.constant 0 : index
    %c0_12 = arith.constant 0 : index
    %6 = vector.load %arg14[%c0_11, %c0_12] : memref<64x32xbf16, #tpu.memory_space<vmem>>, vector<64x32xbf16>
    %c0_13 = arith.constant 0 : index
    %c0_14 = arith.constant 0 : index
    %7 = vector.load %arg5[%c0_13, %c0_14] : memref<1x32xf32, #tpu.memory_space<vmem>>, vector<1x32xf32>
    %8 = vector.shape_cast %7 : vector<1x32xf32> to vector<1x32xf32>
    %9 = vector.broadcast %8 : vector<1x32xf32> to vector<16x32xf32>
    %c0_15 = arith.constant 0 : index
    %c0_16 = arith.constant 0 : index
    %10 = vector.load %arg6[%c0_15, %c0_16] : memref<1x32xf32, #tpu.memory_space<vmem>>, vector<1x32xf32>
    %11 = vector.shape_cast %10 : vector<1x32xf32> to vector<1x32xf32>
    %12 = vector.broadcast %11 : vector<1x32xf32> to vector<16x32xf32>
    %c0_17 = arith.constant 0 : index
    %c0_18 = arith.constant 0 : index
    %13 = vector.load %arg7[%c0_17, %c0_18] : memref<1x32xf32, #tpu.memory_space<vmem>>, vector<1x32xf32>
    %14 = vector.shape_cast %13 : vector<1x32xf32> to vector<1x32xf32>
    %15 = vector.broadcast %14 : vector<1x32xf32> to vector<16x32xf32>
    %c0_19 = arith.constant 0 : index
    %c0_20 = arith.constant 0 : index
    %16 = vector.load %arg9[%c0_19, %c0_20] : memref<1x32xf32, #tpu.memory_space<vmem>>, vector<1x32xf32>
    %17 = vector.shape_cast %16 : vector<1x32xf32> to vector<1x32xf32>
    %18 = vector.broadcast %17 : vector<1x32xf32> to vector<16x32xf32>
    %c0_21 = arith.constant 0 : index
    %c0_22 = arith.constant 0 : index
    %19 = vector.load %arg13[%c0_21, %c0_22] : memref<1x64xf32, #tpu.memory_space<vmem>>, vector<1x64xf32>
    %20 = vector.shape_cast %19 : vector<1x64xf32> to vector<1x64xf32>
    %21 = vector.broadcast %20 : vector<1x64xf32> to vector<16x64xf32>
    %c0_23 = arith.constant 0 : index
    %c0_24 = arith.constant 0 : index
    %22 = vector.load %arg15[%c0_23, %c0_24] : memref<1x32xf32, #tpu.memory_space<vmem>>, vector<1x32xf32>
    %23 = vector.shape_cast %22 : vector<1x32xf32> to vector<1x32xf32>
    %24 = vector.broadcast %23 : vector<1x32xf32> to vector<16x32xf32>
    %c0_25 = arith.constant 0 : index
    %c0_26 = arith.constant 0 : index
    %25 = vector.load %arg10[%c0_25, %c0_26] : memref<1x32xf32, #tpu.memory_space<vmem>>, vector<1x32xf32>
    %26 = vector.shape_cast %25 : vector<1x32xf32> to vector<1x32xf32>
    %27 = vector.broadcast %26 : vector<1x32xf32> to vector<16x32xf32>
    %c0_27 = arith.constant 0 : index
    %c0_28 = arith.constant 0 : index
    %28 = vector.load %arg11[%c0_27, %c0_28] : memref<1x32xf32, #tpu.memory_space<vmem>>, vector<1x32xf32>
    %29 = vector.shape_cast %28 : vector<1x32xf32> to vector<1x32xf32>
    %30 = vector.broadcast %29 : vector<1x32xf32> to vector<16x32xf32>
    %c0_29 = arith.constant 0 : index
    %c0_30 = arith.constant 0 : index
    %31 = vector.load %arg16[%c0_29, %c0_30] : memref<1x32xf32, #tpu.memory_space<vmem>>, vector<1x32xf32>
    %32 = vector.shape_cast %31 : vector<1x32xf32> to vector<1x32xf32>
    %33 = vector.broadcast %32 : vector<1x32xf32> to vector<16x32xf32>
    %c0_31 = arith.constant 0 : index
    %c0_32 = arith.constant 0 : index
    %34 = vector.load %arg17[%c0_31, %c0_32] : memref<1x32xf32, #tpu.memory_space<vmem>>, vector<1x32xf32>
    %35 = vector.shape_cast %34 : vector<1x32xf32> to vector<1x32xf32>
    %36 = vector.broadcast %35 : vector<1x32xf32> to vector<16x32xf32>
    %c0_i32 = arith.constant 0 : i32
    %c2_i32 = arith.constant 2 : i32
    %37 = arith.addi %c0_i32, %c2_i32 : i32
    %c1_i32 = arith.constant 1 : i32
    %38 = scf.for %arg19 = %c0_i32 to %37 step %c1_i32 iter_args(%arg20 = %0) -> (vector<16x32xf32>)  : i32 {
      %40 = arith.truncf %arg20 : vector<16x32xf32> to vector<16x32xbf16>
      %cst = arith.constant dense<0.000000e+00> : vector<16x32xf32>
      %41 = tpu.matmul %40, %1, %cst {dimension_numbers = #tpu.dot_dimension_numbers<[1], [0], [0], [1], [0, 0, 1, 1], [], []>} : vector<16x32xbf16>, vector<32x32xbf16>, vector<16x32xf32> -> vector<16x32xf32>
      %42 = arith.addf %41, %9 : vector<16x32xf32>
      %cst_35 = arith.constant dense<0.000000e+00> : vector<16x32xf32>
      %43 = tpu.matmul %40, %2, %cst_35 {dimension_numbers = #tpu.dot_dimension_numbers<[1], [0], [0], [1], [0, 0, 1, 1], [], []>} : vector<16x32xbf16>, vector<32x32xbf16>, vector<16x32xf32> -> vector<16x32xf32>
      %44 = arith.addf %43, %12 : vector<16x32xf32>
      %cst_36 = arith.constant dense<0.000000e+00> : vector<16x32xf32>
      %45 = tpu.matmul %40, %3, %cst_36 {dimension_numbers = #tpu.dot_dimension_numbers<[1], [0], [0], [1], [0, 0, 1, 1], [], []>} : vector<16x32xbf16>, vector<32x32xbf16>, vector<16x32xf32> -> vector<16x32xf32>
      %46 = arith.addf %45, %15 : vector<16x32xf32>
      %47 = vector.extract_strided_slice %42 {offsets = [0, 0], sizes = [8, 8], strides = [1, 1]} : vector<16x32xf32> to vector<8x8xf32>
      %48 = vector.extract_strided_slice %42 {offsets = [0, 8], sizes = [8, 8], strides = [1, 1]} : vector<16x32xf32> to vector<8x8xf32>
      %49 = vector.extract_strided_slice %42 {offsets = [0, 16], sizes = [8, 8], strides = [1, 1]} : vector<16x32xf32> to vector<8x8xf32>
      %50 = vector.extract_strided_slice %42 {offsets = [0, 24], sizes = [8, 8], strides = [1, 1]} : vector<16x32xf32> to vector<8x8xf32>
      %51 = vector.extract_strided_slice %42 {offsets = [8, 0], sizes = [8, 8], strides = [1, 1]} : vector<16x32xf32> to vector<8x8xf32>
      %52 = vector.extract_strided_slice %42 {offsets = [8, 8], sizes = [8, 8], strides = [1, 1]} : vector<16x32xf32> to vector<8x8xf32>
      %53 = vector.extract_strided_slice %42 {offsets = [8, 16], sizes = [8, 8], strides = [1, 1]} : vector<16x32xf32> to vector<8x8xf32>
      %54 = vector.extract_strided_slice %42 {offsets = [8, 24], sizes = [8, 8], strides = [1, 1]} : vector<16x32xf32> to vector<8x8xf32>
      %55 = vector.shape_cast %47 : vector<8x8xf32> to vector<1x8x8xf32>
      %56 = vector.shape_cast %48 : vector<8x8xf32> to vector<1x8x8xf32>
      %57 = vector.shape_cast %49 : vector<8x8xf32> to vector<1x8x8xf32>
      %58 = vector.shape_cast %50 : vector<8x8xf32> to vector<1x8x8xf32>
      %59 = vector.shape_cast %51 : vector<8x8xf32> to vector<1x8x8xf32>
      %60 = vector.shape_cast %52 : vector<8x8xf32> to vector<1x8x8xf32>
      %61 = vector.shape_cast %53 : vector<8x8xf32> to vector<1x8x8xf32>
      %62 = vector.shape_cast %54 : vector<8x8xf32> to vector<1x8x8xf32>
      %63 = tpu.concatenate %55, %56, %57, %58, %59, %60, %61, %62 in 0 : vector<1x8x8xf32>, vector<1x8x8xf32>, vector<1x8x8xf32>, vector<1x8x8xf32>, vector<1x8x8xf32>, vector<1x8x8xf32>, vector<1x8x8xf32>, vector<1x8x8xf32> -> vector<8x8x8xf32>
      %64 = arith.truncf %63 : vector<8x8x8xf32> to vector<8x8x8xbf16>
      %65 = vector.extract_strided_slice %44 {offsets = [0, 0], sizes = [8, 8], strides = [1, 1]} : vector<16x32xf32> to vector<8x8xf32>
      %66 = vector.extract_strided_slice %44 {offsets = [0, 8], sizes = [8, 8], strides = [1, 1]} : vector<16x32xf32> to vector<8x8xf32>
      %67 = vector.extract_strided_slice %44 {offsets = [0, 16], sizes = [8, 8], strides = [1, 1]} : vector<16x32xf32> to vector<8x8xf32>
      %68 = vector.extract_strided_slice %44 {offsets = [0, 24], sizes = [8, 8], strides = [1, 1]} : vector<16x32xf32> to vector<8x8xf32>
      %69 = vector.extract_strided_slice %44 {offsets = [8, 0], sizes = [8, 8], strides = [1, 1]} : vector<16x32xf32> to vector<8x8xf32>
      %70 = vector.extract_strided_slice %44 {offsets = [8, 8], sizes = [8, 8], strides = [1, 1]} : vector<16x32xf32> to vector<8x8xf32>
      %71 = vector.extract_strided_slice %44 {offsets = [8, 16], sizes = [8, 8], strides = [1, 1]} : vector<16x32xf32> to vector<8x8xf32>
      %72 = vector.extract_strided_slice %44 {offsets = [8, 24], sizes = [8, 8], strides = [1, 1]} : vector<16x32xf32> to vector<8x8xf32>
      %73 = vector.shape_cast %65 : vector<8x8xf32> to vector<1x8x8xf32>
      %74 = vector.shape_cast %66 : vector<8x8xf32> to vector<1x8x8xf32>
      %75 = vector.shape_cast %67 : vector<8x8xf32> to vector<1x8x8xf32>
      %76 = vector.shape_cast %68 : vector<8x8xf32> to vector<1x8x8xf32>
      %77 = vector.shape_cast %69 : vector<8x8xf32> to vector<1x8x8xf32>
      %78 = vector.shape_cast %70 : vector<8x8xf32> to vector<1x8x8xf32>
      %79 = vector.shape_cast %71 : vector<8x8xf32> to vector<1x8x8xf32>
      %80 = vector.shape_cast %72 : vector<8x8xf32> to vector<1x8x8xf32>
      %81 = tpu.concatenate %73, %74, %75, %76, %77, %78, %79, %80 in 0 : vector<1x8x8xf32>, vector<1x8x8xf32>, vector<1x8x8xf32>, vector<1x8x8xf32>, vector<1x8x8xf32>, vector<1x8x8xf32>, vector<1x8x8xf32>, vector<1x8x8xf32> -> vector<8x8x8xf32>
      %82 = arith.truncf %81 : vector<8x8x8xf32> to vector<8x8x8xbf16>
      %83 = vector.extract_strided_slice %46 {offsets = [0, 0], sizes = [8, 8], strides = [1, 1]} : vector<16x32xf32> to vector<8x8xf32>
      %84 = vector.extract_strided_slice %46 {offsets = [0, 8], sizes = [8, 8], strides = [1, 1]} : vector<16x32xf32> to vector<8x8xf32>
      %85 = vector.extract_strided_slice %46 {offsets = [0, 16], sizes = [8, 8], strides = [1, 1]} : vector<16x32xf32> to vector<8x8xf32>
      %86 = vector.extract_strided_slice %46 {offsets = [0, 24], sizes = [8, 8], strides = [1, 1]} : vector<16x32xf32> to vector<8x8xf32>
      %87 = vector.extract_strided_slice %46 {offsets = [8, 0], sizes = [8, 8], strides = [1, 1]} : vector<16x32xf32> to vector<8x8xf32>
      %88 = vector.extract_strided_slice %46 {offsets = [8, 8], sizes = [8, 8], strides = [1, 1]} : vector<16x32xf32> to vector<8x8xf32>
      %89 = vector.extract_strided_slice %46 {offsets = [8, 16], sizes = [8, 8], strides = [1, 1]} : vector<16x32xf32> to vector<8x8xf32>
      %90 = vector.extract_strided_slice %46 {offsets = [8, 24], sizes = [8, 8], strides = [1, 1]} : vector<16x32xf32> to vector<8x8xf32>
      %91 = vector.shape_cast %83 : vector<8x8xf32> to vector<1x8x8xf32>
      %92 = vector.shape_cast %84 : vector<8x8xf32> to vector<1x8x8xf32>
      %93 = vector.shape_cast %85 : vector<8x8xf32> to vector<1x8x8xf32>
      %94 = vector.shape_cast %86 : vector<8x8xf32> to vector<1x8x8xf32>
      %95 = vector.shape_cast %87 : vector<8x8xf32> to vector<1x8x8xf32>
      %96 = vector.shape_cast %88 : vector<8x8xf32> to vector<1x8x8xf32>
      %97 = vector.shape_cast %89 : vector<8x8xf32> to vector<1x8x8xf32>
      %98 = vector.shape_cast %90 : vector<8x8xf32> to vector<1x8x8xf32>
      %99 = tpu.concatenate %91, %92, %93, %94, %95, %96, %97, %98 in 0 : vector<1x8x8xf32>, vector<1x8x8xf32>, vector<1x8x8xf32>, vector<1x8x8xf32>, vector<1x8x8xf32>, vector<1x8x8xf32>, vector<1x8x8xf32>, vector<1x8x8xf32> -> vector<8x8x8xf32>
      %100 = arith.truncf %99 : vector<8x8x8xf32> to vector<8x8x8xbf16>
      "tpu.trace_start"() <{level = 10 : i32, message = "nqd,nkd->nqk"}> : () -> ()
      %cst_37 = arith.constant dense<0.000000e+00> : vector<8x8x8xf32>
      %101 = tpu.matmul %64, %82, %cst_37 {dimension_numbers = #tpu.dot_dimension_numbers<[2], [2], [1], [1], [0, 0, 0, 1, 1, 1], [0], [0]>} : vector<8x8x8xbf16>, vector<8x8x8xbf16>, vector<8x8x8xf32> -> vector<8x8x8xf32>
      "tpu.trace_stop"() : () -> ()
      %cst_38 = arith.constant 0.353553385 : f32
      %102 = vector.broadcast %cst_38 : f32 to vector<8x8x8xf32>
      %103 = arith.mulf %101, %102 : vector<8x8x8xf32>
      %cst_39 = arith.constant dense<0xFF800000> : vector<8x8xf32>
      %104 = vector.multi_reduction <maximumf>, %103, %cst_39 [2] : vector<8x8x8xf32> to vector<8x8xf32>
      %105 = vector.shape_cast %104 : vector<8x8xf32> to vector<8x8x1xf32>
      %106 = vector.broadcast %105 : vector<8x8x1xf32> to vector<8x8x8xf32>
      %107 = arith.subf %103, %106 : vector<8x8x8xf32>
      %108 = math.exp %107 : vector<8x8x8xf32>
      %cst_40 = arith.constant dense<0.000000e+00> : vector<8x8xf32>
      %109 = vector.multi_reduction <add>, %108, %cst_40 [2] : vector<8x8x8xf32> to vector<8x8xf32>
      %110 = vector.shape_cast %109 : vector<8x8xf32> to vector<8x8x1xf32>
      %111 = tpu.reciprocal %110 {approx = true} : vector<8x8x1xf32> -> vector<8x8x1xf32>
      %112 = vector.broadcast %111 : vector<8x8x1xf32> to vector<8x8x8xf32>
      %113 = arith.mulf %108, %112 : vector<8x8x8xf32>
      %114 = arith.truncf %113 : vector<8x8x8xf32> to vector<8x8x8xbf16>
      "tpu.trace_start"() <{level = 10 : i32, message = "nqk,nkd->nqd"}> : () -> ()
      %cst_41 = arith.constant dense<0.000000e+00> : vector<8x8x8xf32>
      %115 = tpu.matmul %114, %100, %cst_41 {dimension_numbers = #tpu.dot_dimension_numbers<[2], [1], [1], [2], [0, 0, 0, 1, 1, 2], [0], [0]>} : vector<8x8x8xbf16>, vector<8x8x8xbf16>, vector<8x8x8xf32> -> vector<8x8x8xf32>
      "tpu.trace_stop"() : () -> ()
      %116 = vector.extract_strided_slice %115 {offsets = [0, 0, 0], sizes = [1, 8, 8], strides = [1, 1, 1]} : vector<8x8x8xf32> to vector<1x8x8xf32>
      %117 = vector.shape_cast %116 : vector<1x8x8xf32> to vector<8x8xf32>
      %118 = vector.extract_strided_slice %115 {offsets = [1, 0, 0], sizes = [1, 8, 8], strides = [1, 1, 1]} : vector<8x8x8xf32> to vector<1x8x8xf32>
      %119 = vector.shape_cast %118 : vector<1x8x8xf32> to vector<8x8xf32>
      %120 = vector.extract_strided_slice %115 {offsets = [2, 0, 0], sizes = [1, 8, 8], strides = [1, 1, 1]} : vector<8x8x8xf32> to vector<1x8x8xf32>
      %121 = vector.shape_cast %120 : vector<1x8x8xf32> to vector<8x8xf32>
      %122 = vector.extract_strided_slice %115 {offsets = [3, 0, 0], sizes = [1, 8, 8], strides = [1, 1, 1]} : vector<8x8x8xf32> to vector<1x8x8xf32>
      %123 = vector.shape_cast %122 : vector<1x8x8xf32> to vector<8x8xf32>
      %124 = tpu.concatenate %117, %119, %121, %123 in 1 : vector<8x8xf32>, vector<8x8xf32>, vector<8x8xf32>, vector<8x8xf32> -> vector<8x32xf32>
      %125 = vector.extract_strided_slice %115 {offsets = [4, 0, 0], sizes = [1, 8, 8], strides = [1, 1, 1]} : vector<8x8x8xf32> to vector<1x8x8xf32>
      %126 = vector.shape_cast %125 : vector<1x8x8xf32> to vector<8x8xf32>
      %127 = vector.extract_strided_slice %115 {offsets = [5, 0, 0], sizes = [1, 8, 8], strides = [1, 1, 1]} : vector<8x8x8xf32> to vector<1x8x8xf32>
      %128 = vector.shape_cast %127 : vector<1x8x8xf32> to vector<8x8xf32>
      %129 = vector.extract_strided_slice %115 {offsets = [6, 0, 0], sizes = [1, 8, 8], strides = [1, 1, 1]} : vector<8x8x8xf32> to vector<1x8x8xf32>
      %130 = vector.shape_cast %129 : vector<1x8x8xf32> to vector<8x8xf32>
      %131 = vector.extract_strided_slice %115 {offsets = [7, 0, 0], sizes = [1, 8, 8], strides = [1, 1, 1]} : vector<8x8x8xf32> to vector<1x8x8xf32>
      %132 = vector.shape_cast %131 : vector<1x8x8xf32> to vector<8x8xf32>
      %133 = tpu.concatenate %126, %128, %130, %132 in 1 : vector<8x8xf32>, vector<8x8xf32>, vector<8x8xf32>, vector<8x8xf32> -> vector<8x32xf32>
      %134 = tpu.concatenate %124, %133 in 0 : vector<8x32xf32>, vector<8x32xf32> -> vector<16x32xf32>
      %135 = arith.truncf %134 : vector<16x32xf32> to vector<16x32xbf16>
      %cst_42 = arith.constant dense<0.000000e+00> : vector<16x32xf32>
      %136 = tpu.matmul %135, %4, %cst_42 {dimension_numbers = #tpu.dot_dimension_numbers<[1], [0], [0], [1], [0, 0, 1, 1], [], []>} : vector<16x32xbf16>, vector<32x32xbf16>, vector<16x32xf32> -> vector<16x32xf32>
      %137 = arith.addf %136, %18 : vector<16x32xf32>
      %138 = arith.addf %arg20, %137 : vector<16x32xf32>
      %cst_43 = arith.constant dense<0.000000e+00> : vector<16xf32>
      %139 = vector.multi_reduction <add>, %138, %cst_43 [1] : vector<16x32xf32> to vector<16xf32>
      %140 = vector.shape_cast %139 : vector<16xf32> to vector<16x1xf32>
      %cst_44 = arith.constant 3.200000e+01 : f32
      %141 = vector.broadcast %cst_44 : f32 to vector<16x1xf32>
      %142 = arith.divf %140, %141 : vector<16x1xf32>
      %143 = vector.broadcast %142 : vector<16x1xf32> to vector<16x32xf32>
      %144 = arith.subf %138, %143 : vector<16x32xf32>
      %145 = arith.mulf %144, %144 : vector<16x32xf32>
      %cst_45 = arith.constant dense<0.000000e+00> : vector<16xf32>
      %146 = vector.multi_reduction <add>, %145, %cst_45 [1] : vector<16x32xf32> to vector<16xf32>
      %147 = vector.shape_cast %146 : vector<16xf32> to vector<16x1xf32>
      %cst_46 = arith.constant 3.200000e+01 : f32
      %148 = vector.broadcast %cst_46 : f32 to vector<16x1xf32>
      %149 = arith.divf %147, %148 : vector<16x1xf32>
      %150 = vector.broadcast %142 : vector<16x1xf32> to vector<16x32xf32>
      %151 = arith.subf %138, %150 : vector<16x32xf32>
      %cst_47 = arith.constant 9.99999974E-6 : f32
      %152 = vector.broadcast %cst_47 : f32 to vector<16x1xf32>
      %153 = arith.addf %149, %152 : vector<16x1xf32>
      %154 = math.rsqrt %153 : vector<16x1xf32>
      %155 = vector.broadcast %154 : vector<16x1xf32> to vector<16x32xf32>
      %156 = arith.mulf %151, %155 : vector<16x32xf32>
      %157 = arith.mulf %156, %27 : vector<16x32xf32>
      %158 = arith.addf %157, %30 : vector<16x32xf32>
      %159 = arith.truncf %158 : vector<16x32xf32> to vector<16x32xbf16>
      %cst_48 = arith.constant dense<0.000000e+00> : vector<16x64xf32>
      %160 = tpu.matmul %159, %5, %cst_48 {dimension_numbers = #tpu.dot_dimension_numbers<[1], [0], [0], [1], [0, 0, 1, 1], [], []>} : vector<16x32xbf16>, vector<32x64xbf16>, vector<16x64xf32> -> vector<16x64xf32>
      %161 = arith.addf %160, %21 : vector<16x64xf32>
      %cst_49 = arith.constant 0.000000e+00 : f32
      %162 = vector.broadcast %cst_49 : f32 to vector<16x64xf32>
      %163 = arith.maximumf %161, %162 : vector<16x64xf32>
      %164 = arith.truncf %163 : vector<16x64xf32> to vector<16x64xbf16>
      %cst_50 = arith.constant dense<0.000000e+00> : vector<16x32xf32>
      %165 = tpu.matmul %164, %6, %cst_50 {dimension_numbers = #tpu.dot_dimension_numbers<[1], [0], [0], [1], [0, 0, 1, 1], [], []>} : vector<16x64xbf16>, vector<64x32xbf16>, vector<16x32xf32> -> vector<16x32xf32>
      %166 = arith.addf %165, %24 : vector<16x32xf32>
      %167 = arith.addf %158, %166 : vector<16x32xf32>
      %cst_51 = arith.constant dense<0.000000e+00> : vector<16xf32>
      %168 = vector.multi_reduction <add>, %167, %cst_51 [1] : vector<16x32xf32> to vector<16xf32>
      %169 = vector.shape_cast %168 : vector<16xf32> to vector<16x1xf32>
      %cst_52 = arith.constant 3.200000e+01 : f32
      %170 = vector.broadcast %cst_52 : f32 to vector<16x1xf32>
      %171 = arith.divf %169, %170 : vector<16x1xf32>
      %172 = vector.broadcast %171 : vector<16x1xf32> to vector<16x32xf32>
      %173 = arith.subf %167, %172 : vector<16x32xf32>
      %174 = arith.mulf %173, %173 : vector<16x32xf32>
      %cst_53 = arith.constant dense<0.000000e+00> : vector<16xf32>
      %175 = vector.multi_reduction <add>, %174, %cst_53 [1] : vector<16x32xf32> to vector<16xf32>
      %176 = vector.shape_cast %175 : vector<16xf32> to vector<16x1xf32>
      %cst_54 = arith.constant 3.200000e+01 : f32
      %177 = vector.broadcast %cst_54 : f32 to vector<16x1xf32>
      %178 = arith.divf %176, %177 : vector<16x1xf32>
      %179 = vector.broadcast %171 : vector<16x1xf32> to vector<16x32xf32>
      %180 = arith.subf %167, %179 : vector<16x32xf32>
      %cst_55 = arith.constant 9.99999974E-6 : f32
      %181 = vector.broadcast %cst_55 : f32 to vector<16x1xf32>
      %182 = arith.addf %178, %181 : vector<16x1xf32>
      %183 = math.rsqrt %182 : vector<16x1xf32>
      %184 = vector.broadcast %183 : vector<16x1xf32> to vector<16x32xf32>
      %185 = arith.mulf %180, %184 : vector<16x32xf32>
      %186 = arith.mulf %185, %33 : vector<16x32xf32>
      %187 = arith.addf %186, %36 : vector<16x32xf32>
      scf.yield %187 : vector<16x32xf32>
    }
    %c0_33 = arith.constant 0 : index
    %c0_34 = arith.constant 0 : index
    %39 = vector.load %arg18[%c0_33, %c0_34] : memref<16x32xf32, #tpu.memory_space<vmem>>, vector<16x32xf32>
    tpu.vector_store %arg18[%c0_33, %c0_34], %38 {strides = array<i32>} : memref<16x32xf32, #tpu.memory_space<vmem>>, vector<16x32xf32>,
    return
  }
  func.func @transform_0(%arg0: i32) -> (i32, i32) {
    %c0_i32 = arith.constant 0 : i32
    %c0_i32_0 = arith.constant 0 : i32
    %c0_i32_1 = arith.constant 0 : i32
    return %c0_i32, %c0_i32_0 : i32, i32
  }
  func.func @transform_1(%arg0: i32) -> (i32, i32) {
    %c0_i32 = arith.constant 0 : i32
    %c0_i32_0 = arith.constant 0 : i32
    %c0_i32_1 = arith.constant 0 : i32
    return %c0_i32, %c0_i32_0 : i32, i32
  }
  func.func @transform_2(%arg0: i32) -> (i32, i32) {
    %c0_i32 = arith.constant 0 : i32
    %c0_i32_0 = arith.constant 0 : i32
    %c0_i32_1 = arith.constant 0 : i32
    return %c0_i32, %c0_i32_0 : i32, i32
  }
  func.func @transform_3(%arg0: i32) -> (i32, i32) {
    %c0_i32 = arith.constant 0 : i32
    %c0_i32_0 = arith.constant 0 : i32
    %c0_i32_1 = arith.constant 0 : i32
    return %c0_i32, %c0_i32_0 : i32, i32
  }
  func.func @transform_4(%arg0: i32) -> (i32, i32) {
    %c0_i32 = arith.constant 0 : i32
    %c0_i32_0 = arith.constant 0 : i32
    %c0_i32_1 = arith.constant 0 : i32
    return %c0_i32, %c0_i32_0 : i32, i32
  }
  func.func @transform_5(%arg0: i32) -> (i32, i32) {
    %c0_i32 = arith.constant 0 : i32
    %c0_i32_0 = arith.constant 0 : i32
    %c0_i32_1 = arith.constant 0 : i32
    return %c0_i32, %c0_i32_0 : i32, i32
  }
  func.func @transform_6(%arg0: i32) -> (i32, i32) {
    %c0_i32 = arith.constant 0 : i32
    %c0_i32_0 = arith.constant 0 : i32
    %c0_i32_1 = arith.constant 0 : i32
    return %c0_i32, %c0_i32_0 : i32, i32
  }
  func.func @transform_7(%arg0: i32) -> (i32, i32) {
    %c0_i32 = arith.constant 0 : i32
    %c0_i32_0 = arith.constant 0 : i32
    %c0_i32_1 = arith.constant 0 : i32
    return %c0_i32, %c0_i32_0 : i32, i32
  }
  func.func @transform_8(%arg0: i32) -> (i32, i32) {
    %c0_i32 = arith.constant 0 : i32
    %c0_i32_0 = arith.constant 0 : i32
    %c0_i32_1 = arith.constant 0 : i32
    return %c0_i32, %c0_i32_0 : i32, i32
  }
  func.func @transform_9(%arg0: i32) -> (i32, i32) {
    %c0_i32 = arith.constant 0 : i32
    %c0_i32_0 = arith.constant 0 : i32
    %c0_i32_1 = arith.constant 0 : i32
    return %c0_i32, %c0_i32_0 : i32, i32
  }
  func.func @transform_10(%arg0: i32) -> (i32, i32) {
    %c0_i32 = arith.constant 0 : i32
    %c0_i32_0 = arith.constant 0 : i32
    %c0_i32_1 = arith.constant 0 : i32
    return %c0_i32, %c0_i32_0 : i32, i32
  }
  func.func @transform_11(%arg0: i32) -> (i32, i32) {
    %c0_i32 = arith.constant 0 : i32
    %c0_i32_0 = arith.constant 0 : i32
    %c0_i32_1 = arith.constant 0 : i32
    return %c0_i32, %c0_i32_0 : i32, i32
  }
  func.func @transform_12(%arg0: i32) -> (i32, i32) {
    %c0_i32 = arith.constant 0 : i32
    %c0_i32_0 = arith.constant 0 : i32
    %c0_i32_1 = arith.constant 0 : i32
    return %c0_i32, %c0_i32_0 : i32, i32
  }
  func.func @transform_13(%arg0: i32) -> (i32, i32) {
    %c0_i32 = arith.constant 0 : i32
    %c0_i32_0 = arith.constant 0 : i32
    %c0_i32_1 = arith.constant 0 : i32
    return %c0_i32, %c0_i32_0 : i32, i32
  }
  func.func @transform_14(%arg0: i32) -> (i32, i32) {
    %c0_i32 = arith.constant 0 : i32
    %c0_i32_0 = arith.constant 0 : i32
    %c0_i32_1 = arith.constant 0 : i32
    return %c0_i32, %c0_i32_0 : i32, i32
  }
  func.func @transform_15(%arg0: i32) -> (i32, i32) {
    %c0_i32 = arith.constant 0 : i32
    %c0_i32_0 = arith.constant 0 : i32
    %c0_i32_1 = arith.constant 0 : i32
    return %c0_i32, %c0_i32_0 : i32, i32
  }
  func.func @transform_16(%arg0: i32) -> (i32, i32) {
    %c0_i32 = arith.constant 0 : i32
    %c0_i32_0 = arith.constant 0 : i32
    %c0_i32_1 = arith.constant 0 : i32
    return %c0_i32, %c0_i32_0 : i32, i32
  }
  func.func @transform_17(%arg0: i32) -> (i32, i32) {
    %c0_i32 = arith.constant 0 : i32
    %c0_i32_0 = arith.constant 0 : i32
    %c0_i32_1 = arith.constant 0 : i32
    return %c0_i32, %c0_i32_0 : i32, i32
  }
}

</mosaic_0001>

<llo_original>
// kernel: tpu_custom_call.1
$region0: #{tpu_custom_call.1}
  #allocation0 [shape = 'u32[]', space=smem, size = 0x4, offset = 0x4, fixed_abs, tag = 'smem constant byte address 0x4 - core index']
  #allocation1 [shape = 'u32[144,128]{1,0:T(1,128)}', space=vmem, size = 0x12000, scoped, tag = 'internal scratch']
  %s0 = inlined_call_operand.vmem [shape: f32[16,32], index: 0, kind: input, shape index: {}]
  %s1 = inlined_call_operand.vmem [shape: bf16[32,32], index: 1, kind: input, shape index: {}]
  %s2 = inlined_call_operand.vmem [shape: bf16[32,32], index: 2, kind: input, shape index: {}]
  %s3 = inlined_call_operand.hbm [shape: bf16[32,32], index: 3, kind: input, shape index: {}]
  %s4 = inlined_call_operand.vmem [shape: f32[1,32], index: 4, kind: input, shape index: {}]
  %s5 = inlined_call_operand.vmem [shape: f32[1,32], index: 5, kind: input, shape index: {}]
  %s6 = inlined_call_operand.vmem [shape: f32[1,32], index: 6, kind: input, shape index: {}]
  %s7 = inlined_call_operand.hbm [shape: bf16[32,32], index: 7, kind: input, shape index: {}]
  %s8 = inlined_call_operand.vmem [shape: f32[1,32], index: 8, kind: input, shape index: {}]
  %s9 = inlined_call_operand.vmem [shape: f32[1,32], index: 9, kind: input, shape index: {}]
  %s10 = inlined_call_operand.vmem [shape: f32[1,32], index: 10, kind: input, shape index: {}]
  %s11 = inlined_call_operand.hbm [shape: bf16[32,64], index: 11, kind: input, shape index: {}]
  %s12 = inlined_call_operand.vmem [shape: f32[1,64], index: 12, kind: input, shape index: {}]
  %s13 = inlined_call_operand.vmem [shape: bf16[64,32], index: 13, kind: input, shape index: {}]
  %s14 = inlined_call_operand.vmem [shape: f32[1,32], index: 14, kind: input, shape index: {}]
  %s15 = inlined_call_operand.vmem [shape: f32[1,32], index: 15, kind: input, shape index: {}]
  %s16 = inlined_call_operand.vmem [shape: f32[1,32], index: 16, kind: input, shape index: {}]
  %s17 = inlined_call_operand.hbm [shape: f32[16,32], index: 17, kind: output, shape index: {}]
  %s18 = sld [smem:[#allocation0]]
  $region97: #{tpu_custom_call.1} parent=0
    _
  %s20 = ssub.s32 1, %s18
  %s21 = scalar_select 0, %s20, %s18
  $region1: #{tpu_custom_call.1} parent=0
    #allocation2 [shape = 'u8[8192]{0}', space=vmem, size = 0x2000, scoped, tag = 'input window, operand 3, single buffered']
    #allocation3 [shape = 's32[1]{0}', space=sflag, size = 0x4, scoped, tag = 'scoped memory for tpu_custom_call.1']
    #allocation4 [shape = 's32[1]{0}', space=sflag, size = 0x4, scoped, tag = 'scoped memory for tpu_custom_call.1']
    #allocation5 [shape = 'u8[8192]{0}', space=vmem, size = 0x2000, scoped, tag = 'input window, operand 7, single buffered']
    #allocation6 [shape = 's32[1]{0}', space=sflag, size = 0x4, scoped, tag = 'scoped memory for tpu_custom_call.1']
    #allocation7 [shape = 'u8[8192]{0}', space=vmem, size = 0x2000, scoped, tag = 'input window, operand 11, single buffered']
    #allocation8 [shape = 'u8[8192]{0}', space=vmem, size = 0x2000, scoped, tag = 'output window, operand 0, single buffered']
    %22 = vsyncpa [#allocation3], 0
    %23 = vsyncpa [#allocation6], 0
    %24 = vsyncpa [#allocation4], 0
    // Predicated region
    $region2: #{tpu_custom_call.1} parent=1 // pred_check
      _
    $region3: #{tpu_custom_call.1} parent=1 // pred_check_branch
      %26 = sbr.rel (0) target = $region5
    $region4: #{tpu_custom_call.1} parent=1 // pred_region
      _
    $region5: #{tpu_custom_call.1} parent=1 // pred_fallthru
      _
    // Predicated region
    $region6: #{tpu_custom_call.1} parent=1 // pred_check
      _
    $region7: #{tpu_custom_call.1} parent=1 // pred_check_branch
      %28 = sbr.rel (0) target = $region9
    $region8: #{tpu_custom_call.1} parent=1 // pred_region
      _
    $region9: #{tpu_custom_call.1} parent=1 // pred_fallthru
      _
    // Predicated region
    $region10: #{tpu_custom_call.1} parent=1 // pred_check
      _
    $region11: #{tpu_custom_call.1} parent=1 // pred_check_branch
      %30 = sbr.rel (0) target = $region13
    $region12: #{tpu_custom_call.1} parent=1 // pred_region
      _
    $region13: #{tpu_custom_call.1} parent=1 // pred_fallthru
      _
    // Predicated region
    $region14: #{tpu_custom_call.1} parent=1 // pred_check
      _
    $region15: #{tpu_custom_call.1} parent=1 // pred_check_branch
      %32 = sbr.rel (0) target = $region17
    $region16: #{tpu_custom_call.1} parent=1 // pred_region
      %s34 = ssub.s32 256, 256
      %35 = vsyncadd [#allocation3], %s34
      %s36 = sshll.u32 [#allocation2], 4
      %s37 = int_to_ptr.vmem [resolvable:$true] %s36
      %42 = dma.hbm_to_vmem [thread:$0]  %s3, 256, %s37, [#allocation3], 64, 64, 4
    $region17: #{tpu_custom_call.1} parent=1 // pred_fallthru
      _
    // Predicated region
    $region18: #{tpu_custom_call.1} parent=1 // pred_check
      _
    $region19: #{tpu_custom_call.1} parent=1 // pred_check_branch
      %44 = sbr.rel (0) target = $region21
    $region20: #{tpu_custom_call.1} parent=1 // pred_region
      _
    $region21: #{tpu_custom_call.1} parent=1 // pred_fallthru
      _
    // Predicated region
    $region22: #{tpu_custom_call.1} parent=1 // pred_check
      _
    $region23: #{tpu_custom_call.1} parent=1 // pred_check_branch
      %46 = sbr.rel (0) target = $region25
    $region24: #{tpu_custom_call.1} parent=1 // pred_region
      _
    $region25: #{tpu_custom_call.1} parent=1 // pred_fallthru
      _
    // Predicated region
    $region26: #{tpu_custom_call.1} parent=1 // pred_check
      _
    $region27: #{tpu_custom_call.1} parent=1 // pred_check_branch
      %48 = sbr.rel (0) target = $region29
    $region28: #{tpu_custom_call.1} parent=1 // pred_region
      _
    $region29: #{tpu_custom_call.1} parent=1 // pred_fallthru
      _
    // Predicated region
    $region30: #{tpu_custom_call.1} parent=1 // pred_check
      _
    $region31: #{tpu_custom_call.1} parent=1 // pred_check_branch
      %50 = sbr.rel (0) target = $region33
    $region32: #{tpu_custom_call.1} parent=1 // pred_region
      %s52 = ssub.s32 256, 256
      %53 = vsyncadd [#allocation6], %s52
      %s54 = sshll.u32 [#allocation5], 4
      %s55 = int_to_ptr.vmem [resolvable:$true] %s54
      %60 = dma.hbm_to_vmem [thread:$0]  %s7, 256, %s55, [#allocation6], 64, 64, 4
    $region33: #{tpu_custom_call.1} parent=1 // pred_fallthru
      _
    // Predicated region
    $region34: #{tpu_custom_call.1} parent=1 // pred_check
      _
    $region35: #{tpu_custom_call.1} parent=1 // pred_check_branch
      %62 = sbr.rel (0) target = $region37
    $region36: #{tpu_custom_call.1} parent=1 // pred_region
      _
    $region37: #{tpu_custom_call.1} parent=1 // pred_fallthru
      _
    // Predicated region
    $region38: #{tpu_custom_call.1} parent=1 // pred_check
      _
    $region39: #{tpu_custom_call.1} parent=1 // pred_check_branch
      %64 = sbr.rel (0) target = $region41
    $region40: #{tpu_custom_call.1} parent=1 // pred_region
      _
    $region41: #{tpu_custom_call.1} parent=1 // pred_fallthru
      _
    // Predicated region
    $region42: #{tpu_custom_call.1} parent=1 // pred_check
      _
    $region43: #{tpu_custom_call.1} parent=1 // pred_check_branch
      %66 = sbr.rel (0) target = $region45
    $region44: #{tpu_custom_call.1} parent=1 // pred_region
      _
    $region45: #{tpu_custom_call.1} parent=1 // pred_fallthru
      _
    // Predicated region
    $region46: #{tpu_custom_call.1} parent=1 // pred_check
      _
    $region47: #{tpu_custom_call.1} parent=1 // pred_check_branch
      %68 = sbr.rel (0) target = $region49
    $region48: #{tpu_custom_call.1} parent=1 // pred_region
      %s70 = ssub.s32 256, 256
      %71 = vsyncadd [#allocation6], %s70
      %s72 = sshll.u32 [#allocation7], 4
      %s73 = int_to_ptr.vmem [resolvable:$true] %s72
      %78 = dma.hbm_to_vmem [thread:$0]  %s11, 256, %s73, [#allocation6], 64, 64, 4
    $region49: #{tpu_custom_call.1} parent=1 // pred_fallthru
      _
    // Predicated region
    $region50: #{tpu_custom_call.1} parent=1 // pred_check
      _
    $region51: #{tpu_custom_call.1} parent=1 // pred_check_branch
      %80 = sbr.rel (0) target = $region53
    $region52: #{tpu_custom_call.1} parent=1 // pred_region
      _
    $region53: #{tpu_custom_call.1} parent=1 // pred_fallthru
      _
    // Predicated region
    $region54: #{tpu_custom_call.1} parent=1 // pred_check
      _
    $region55: #{tpu_custom_call.1} parent=1 // pred_check_branch
      %82 = sbr.rel (0) target = $region57
    $region56: #{tpu_custom_call.1} parent=1 // pred_region
      _
    $region57: #{tpu_custom_call.1} parent=1 // pred_fallthru
      _
    // Predicated region
    $region58: #{tpu_custom_call.1} parent=1 // pred_check
      _
    $region59: #{tpu_custom_call.1} parent=1 // pred_check_branch
      %84 = sbr.rel (0) target = $region61
    $region60: #{tpu_custom_call.1} parent=1 // pred_region
      _
    $region61: #{tpu_custom_call.1} parent=1 // pred_fallthru
      _
    // Predicated region
    $region62: #{tpu_custom_call.1} parent=1 // pred_check
      _
    $region63: #{tpu_custom_call.1} parent=1 // pred_check_branch
      %86 = sbr.rel (0) target = $region65
    $region64: #{tpu_custom_call.1} parent=1 // pred_region
      _
    $region65: #{tpu_custom_call.1} parent=1 // pred_fallthru
      _
    // Predicated region
    $region66: #{tpu_custom_call.1} parent=1 // pred_check
      _
    $region67: #{tpu_custom_call.1} parent=1 // pred_check_branch
      %88 = sbr.rel (0) target = $region69
    $region68: #{tpu_custom_call.1} parent=1 // pred_region
      _
    $region69: #{tpu_custom_call.1} parent=1 // pred_fallthru
      _
    // Predicated region
    $region70: #{tpu_custom_call.1} parent=1 // pred_check
      _
    $region71: #{tpu_custom_call.1} parent=1 // pred_check_branch
      %90 = sbr.rel (0) target = $region73
    $region72: #{tpu_custom_call.1} parent=1 // pred_region
      %91 = dma.done [#allocation3], 256
    $region73: #{tpu_custom_call.1} parent=1 // pred_fallthru
      _
    // Predicated region
    $region74: #{tpu_custom_call.1} parent=1 // pred_check
      _
    $region75: #{tpu_custom_call.1} parent=1 // pred_check_branch
      %93 = sbr.rel (0) target = $region77
    $region76: #{tpu_custom_call.1} parent=1 // pred_region
      %94 = dma.done [#allocation6], 256
    $region77: #{tpu_custom_call.1} parent=1 // pred_fallthru
      _
    // Predicated region
    $region78: #{tpu_custom_call.1} parent=1 // pred_check
      _
    $region79: #{tpu_custom_call.1} parent=1 // pred_check_branch
      %96 = sbr.rel (0) target = $region81
    $region80: #{tpu_custom_call.1} parent=1 // pred_region
      %97 = dma.done [#allocation6], 256
    $region81: #{tpu_custom_call.1} parent=1 // pred_fallthru
      _
    %v99 = vld [vmem:[%s0] sm:$0xff]
    %v100 = vld [vmem:[%s0 + $0x8] sm:$0xff]
    %v101 = vld [vmem:[%s1] sm:$0xf]
    %v102 = vld [vmem:[%s1 + $0x4] sm:$0xf]
    %v103 = vld [vmem:[%s1 + $0x8] sm:$0xf]
    %v104 = vld [vmem:[%s1 + $0xc] sm:$0xf]
    %v105 = vld [vmem:[%s2] sm:$0xf]
    %v106 = vld [vmem:[%s2 + $0x4] sm:$0xf]
    %v107 = vld [vmem:[%s2 + $0x8] sm:$0xf]
    %v108 = vld [vmem:[%s2 + $0xc] sm:$0xf]
    %v109 = vld [vmem:[#allocation2] sm:$0xf]
    %v110 = vld [vmem:[#allocation2 + $0x4] sm:$0xf]
    %v111 = vld [vmem:[#allocation2 + $0x8] sm:$0xf]
    %v112 = vld [vmem:[#allocation2 + $0xc] sm:$0xf]
    %v113 = vld [vmem:[#allocation5] sm:$0xf]
    %v114 = vld [vmem:[#allocation5 + $0x4] sm:$0xf]
    %v115 = vld [vmem:[#allocation5 + $0x8] sm:$0xf]
    %v116 = vld [vmem:[#allocation5 + $0xc] sm:$0xf]
    %v117 = vld [vmem:[#allocation7] sm:$0xf]
    %v118 = vld [vmem:[#allocation7 + $0x4] sm:$0xf]
    %v119 = vld [vmem:[#allocation7 + $0x8] sm:$0xf]
    %v120 = vld [vmem:[#allocation7 + $0xc] sm:$0xf]
    %v121 = vld [vmem:[%s13] sm:$0xf]
    %v122 = vld [vmem:[%s13 + $0x4] sm:$0xf]
    %v123 = vld [vmem:[%s13 + $0x8] sm:$0xf]
    %v124 = vld [vmem:[%s13 + $0xc] sm:$0xf]
    %v125 = vld [vmem:[%s13 + $0x10] sm:$0xf]
    %v126 = vld [vmem:[%s13 + $0x14] sm:$0xf]
    %v127 = vld [vmem:[%s13 + $0x18] sm:$0xf]
    %v128 = vld [vmem:[%s13 + $0x1c] sm:$0xf]
    %v129 = vld [vmem:[%s4] sm:$0x1]
    %v131 = vlaneseq
    %v132 = vshrl.u32 %v131, 7
    %v133 = vsub.s32 0, %v132
    %v134 = vrot.slane %v129, %v133
    %v136 = vld [vmem:[%s5] sm:$0x1]
    %v138 = vlaneseq
    %v139 = vshrl.u32 %v138, 7
    %v140 = vsub.s32 0, %v139
    %v141 = vrot.slane %v136, %v140
    %v143 = vld [vmem:[%s6] sm:$0x1]
    %v145 = vlaneseq
    %v146 = vshrl.u32 %v145, 7
    %v147 = vsub.s32 0, %v146
    %v148 = vrot.slane %v143, %v147
    %v150 = vld [vmem:[%s8] sm:$0x1]
    %v152 = vlaneseq
    %v153 = vshrl.u32 %v152, 7
    %v154 = vsub.s32 0, %v153
    %v155 = vrot.slane %v150, %v154
    %v157 = vld [vmem:[%s12] sm:$0x1]
    %v159 = vlaneseq
    %v160 = vshrl.u32 %v159, 7
    %v161 = vsub.s32 0, %v160
    %v162 = vrot.slane %v157, %v161
    %v164 = vld [vmem:[%s14] sm:$0x1]
    %v166 = vlaneseq
    %v167 = vshrl.u32 %v166, 7
    %v168 = vsub.s32 0, %v167
    %v169 = vrot.slane %v164, %v168
    %v171 = vld [vmem:[%s9] sm:$0x1]
    %v173 = vlaneseq
    %v174 = vshrl.u32 %v173, 7
    %v175 = vsub.s32 0, %v174
    %v176 = vrot.slane %v171, %v175
    %v178 = vld [vmem:[%s10] sm:$0x1]
    %v180 = vlaneseq
    %v181 = vshrl.u32 %v180, 7
    %v182 = vsub.s32 0, %v181
    %v183 = vrot.slane %v178, %v182
    %v185 = vld [vmem:[%s15] sm:$0x1]
    %v187 = vlaneseq
    %v188 = vshrl.u32 %v187, 7
    %v189 = vsub.s32 0, %v188
    %v190 = vrot.slane %v185, %v189
    %v192 = vld [vmem:[%s16] sm:$0x1]
    %v194 = vlaneseq
    %v195 = vshrl.u32 %v194, 7
    %v196 = vsub.s32 0, %v195
    %v197 = vrot.slane %v192, %v196
    loop: start=0, step=1, limit=2
    $region82: #{tpu_custom_call.1} parent=1 // loop_pre_header
      _
    $region83: #{tpu_custom_call.1} parent=1 // loop_header
      %s200 = sphi 0, %s204
      %p201 = scmp.ge.s32.totalorder %s200, 2
      %v205 = vphi %v99, %v1578
      %v206 = vphi %v100, %v1579
    $region84: #{tpu_custom_call.1} parent=1 // loop_header_branch
      %203 = sbr.rel (%p201) target = $region88
    $region85: #{tpu_custom_call.1} parent=1 // loop_body
      %v207 = vpack.c.bf16 %v206, %v205
      %v212 = vunpack.c.l.b16 %v101
      %v213 = vunpack.c.l.b16 %v102
      %v214 = vunpack.c.l.b16 %v103
      %v215 = vunpack.c.l.b16 %v104
      %v216 = vpack.c.b16 %v213, %v212
      %v217 = vpack.c.b16 %v215, %v214
      %vm220 = vcmask 261120
      %v222 = vsel %vm220, %v207, 0
      %224 = vmatprep.subr.bf16.mxu0 0
      %225 = vmatpush1.bf16.msra.mxu0 0
      %226 = vmatprep.subr.bf16.mxu0 0
      %227 = vmatpush1.bf16.msra.mxu0 0
      %228 = vmatprep.subr.bf16.mxu0 0
      %229 = vmatpush1.bf16.msra.mxu0 0
      %230 = vmatprep.subr.bf16.mxu0 0
      %231 = vmatpush1.bf16.msra.mxu0 0
      %232 = vmatprep.subr.bf16.mxu0 0
      %233 = vmatpush1.bf16.msra.mxu0 0
      %234 = vmatprep.subr.bf16.mxu0 0
      %235 = vmatpush1.bf16.msra.mxu0 0
      %236 = vmatprep.subr.bf16.mxu0 0
      %237 = vmatpush1.bf16.msra.mxu0 %v217
      %238 = vmatprep.subr.bf16.mxu0 0
      %239 = vmatpush1.bf16.msra.mxu0 %v216
      %240 = vmatprep.subr.bf16.mxu0 0
      %241 = vmatpush2.bf16.msra.mxu0 0
      %242 = vmatprep.subr.bf16.mxu0 0
      %243 = vmatpush2.bf16.msra.mxu0 0
      %244 = vmatprep.subr.bf16.mxu0 0
      %245 = vmatpush2.bf16.msra.mxu0 0
      %246 = vmatprep.subr.bf16.mxu0 0
      %247 = vmatpush2.bf16.msra.mxu0 0
      %248 = vmatprep.subr.bf16.mxu0 0
      %249 = vmatpush2.bf16.msra.mxu0 0
      %250 = vmatprep.subr.bf16.mxu0 0
      %251 = vmatpush2.bf16.msra.mxu0 0
      %252 = vmatprep.subr.bf16.mxu0 0
      %253 = vmatpush2.bf16.msra.mxu0 0
      %254 = vmatprep.subr.bf16.mxu0 0
      %255 = vmatpush2.bf16.msra.mxu0 0
      %256 = vmatprep.mubr.bf16.mxu0 0
      %257 = vmatmul.mubr.bf16.gmra.mxu0 %v222
      %v258 = vpop.f32.mrf.mxu0
      %v259 = vadd.f32 %v134, %v258
      %v260 = vpop.f32.mrf.mxu0
      %v261 = vpop.f32.mrf.mxu0
      %v262 = vadd.f32 %v134, %v261
      %v263 = vpop.f32.mrf.mxu0
      %264 = vdwg.mxu0
      %v269 = vunpack.c.l.b16 %v105
      %v270 = vunpack.c.l.b16 %v106
      %v271 = vunpack.c.l.b16 %v107
      %v272 = vunpack.c.l.b16 %v108
      %v273 = vpack.c.b16 %v270, %v269
      %v274 = vpack.c.b16 %v272, %v271
      %277 = vmatprep.subr.bf16.mxu0 0
      %278 = vmatpush1.bf16.msra.mxu0 0
      %279 = vmatprep.subr.bf16.mxu0 0
      %280 = vmatpush1.bf16.msra.mxu0 0
      %281 = vmatprep.subr.bf16.mxu0 0
      %282 = vmatpush1.bf16.msra.mxu0 0
      %283 = vmatprep.subr.bf16.mxu0 0
      %284 = vmatpush1.bf16.msra.mxu0 0
      %285 = vmatprep.subr.bf16.mxu0 0
      %286 = vmatpush1.bf16.msra.mxu0 0
      %287 = vmatprep.subr.bf16.mxu0 0
      %288 = vmatpush1.bf16.msra.mxu0 0
      %289 = vmatprep.subr.bf16.mxu0 0
      %290 = vmatpush1.bf16.msra.mxu0 %v274
      %291 = vmatprep.subr.bf16.mxu0 0
      %292 = vmatpush1.bf16.msra.mxu0 %v273
      %293 = vmatprep.subr.bf16.mxu0 0
      %294 = vmatpush2.bf16.msra.mxu0 0
      %295 = vmatprep.subr.bf16.mxu0 0
      %296 = vmatpush2.bf16.msra.mxu0 0
      %297 = vmatprep.subr.bf16.mxu0 0
      %298 = vmatpush2.bf16.msra.mxu0 0
      %299 = vmatprep.subr.bf16.mxu0 0
      %300 = vmatpush2.bf16.msra.mxu0 0
      %301 = vmatprep.subr.bf16.mxu0 0
      %302 = vmatpush2.bf16.msra.mxu0 0
      %303 = vmatprep.subr.bf16.mxu0 0
      %304 = vmatpush2.bf16.msra.mxu0 0
      %305 = vmatprep.subr.bf16.mxu0 0
      %306 = vmatpush2.bf16.msra.mxu0 0
      %307 = vmatprep.subr.bf16.mxu0 0
      %308 = vmatpush2.bf16.msra.mxu0 0
      %309 = vmatprep.mubr.bf16.mxu0 0
      %310 = vmatmul.mubr.bf16.gmra.mxu0 %v222
      %v311 = vpop.f32.mrf.mxu0
      %v312 = vadd.f32 %v141, %v311
      %v313 = vpop.f32.mrf.mxu0
      %v314 = vpop.f32.mrf.mxu0
      %v315 = vadd.f32 %v141, %v314
      %v316 = vpop.f32.mrf.mxu0
      %317 = vdwg.mxu0
      %v322 = vunpack.c.l.b16 %v109
      %v323 = vunpack.c.l.b16 %v110
      %v324 = vunpack.c.l.b16 %v111
      %v325 = vunpack.c.l.b16 %v112
      %v326 = vpack.c.b16 %v323, %v322
      %v327 = vpack.c.b16 %v325, %v324
      %330 = vmatprep.subr.bf16.mxu0 0
      %331 = vmatpush1.bf16.msra.mxu0 0
      %332 = vmatprep.subr.bf16.mxu0 0
      %333 = vmatpush1.bf16.msra.mxu0 0
      %334 = vmatprep.subr.bf16.mxu0 0
      %335 = vmatpush1.bf16.msra.mxu0 0
      %336 = vmatprep.subr.bf16.mxu0 0
      %337 = vmatpush1.bf16.msra.mxu0 0
      %338 = vmatprep.subr.bf16.mxu0 0
      %339 = vmatpush1.bf16.msra.mxu0 0
      %340 = vmatprep.subr.bf16.mxu0 0
      %341 = vmatpush1.bf16.msra.mxu0 0
      %342 = vmatprep.subr.bf16.mxu0 0
      %343 = vmatpush1.bf16.msra.mxu0 %v327
      %344 = vmatprep.subr.bf16.mxu0 0
      %345 = vmatpush1.bf16.msra.mxu0 %v326
      %346 = vmatprep.subr.bf16.mxu0 0
      %347 = vmatpush2.bf16.msra.mxu0 0
      %348 = vmatprep.subr.bf16.mxu0 0
      %349 = vmatpush2.bf16.msra.mxu0 0
      %350 = vmatprep.subr.bf16.mxu0 0
      %351 = vmatpush2.bf16.msra.mxu0 0
      %352 = vmatprep.subr.bf16.mxu0 0
      %353 = vmatpush2.bf16.msra.mxu0 0
      %354 = vmatprep.subr.bf16.mxu0 0
      %355 = vmatpush2.bf16.msra.mxu0 0
      %356 = vmatprep.subr.bf16.mxu0 0
      %357 = vmatpush2.bf16.msra.mxu0 0
      %358 = vmatprep.subr.bf16.mxu0 0
      %359 = vmatpush2.bf16.msra.mxu0 0
      %360 = vmatprep.subr.bf16.mxu0 0
      %361 = vmatpush2.bf16.msra.mxu0 0
      %362 = vmatprep.mubr.bf16.mxu0 0
      %363 = vmatmul.mubr.bf16.gmra.mxu0 %v222
      %v364 = vpop.f32.mrf.mxu0
      %v365 = vadd.f32 %v148, %v364
      %v366 = vpop.f32.mrf.mxu0
      %v367 = vpop.f32.mrf.mxu0
      %v368 = vadd.f32 %v148, %v367
      %v369 = vpop.f32.mrf.mxu0
      %370 = vdwg.mxu0
      %372 = vrot.lane.b32.xlu0 %v259, 120
      %v373 = vpop.permute.xlu0 %372
      %375 = vrot.lane.b32.xlu0 %v259, 112
      %v376 = vpop.permute.xlu0 %375
      %378 = vrot.lane.b32.xlu0 %v259, 104
      %v379 = vpop.permute.xlu0 %378
      %382 = vrot.lane.b32.xlu0 %v262, 120
      %v383 = vpop.permute.xlu0 %382
      %385 = vrot.lane.b32.xlu0 %v262, 112
      %v386 = vpop.permute.xlu0 %385
      %388 = vrot.lane.b32.xlu0 %v262, 104
      %v389 = vpop.permute.xlu0 %388
      %v391 = vpack.c.bf16 %v259, %v259
      %v392 = vpack.c.bf16 %v373, %v373
      %v393 = vpack.c.bf16 %v376, %v376
      %v394 = vpack.c.bf16 %v379, %v379
      %v395 = vpack.c.bf16 %v262, %v262
      %v396 = vpack.c.bf16 %v383, %v383
      %v397 = vpack.c.bf16 %v386, %v386
      %v398 = vpack.c.bf16 %v389, %v389
      %400 = vrot.lane.b32.xlu0 %v312, 120
      %v401 = vpop.permute.xlu0 %400
      %403 = vrot.lane.b32.xlu0 %v312, 112
      %v404 = vpop.permute.xlu0 %403
      %406 = vrot.lane.b32.xlu0 %v312, 104
      %v407 = vpop.permute.xlu0 %406
      %410 = vrot.lane.b32.xlu0 %v315, 120
      %v411 = vpop.permute.xlu0 %410
      %413 = vrot.lane.b32.xlu0 %v315, 112
      %v414 = vpop.permute.xlu0 %413
      %416 = vrot.lane.b32.xlu0 %v315, 104
      %v417 = vpop.permute.xlu0 %416
      %v419 = vpack.c.bf16 %v312, %v312
      %v420 = vpack.c.bf16 %v401, %v401
      %v421 = vpack.c.bf16 %v404, %v404
      %v422 = vpack.c.bf16 %v407, %v407
      %v423 = vpack.c.bf16 %v315, %v315
      %v424 = vpack.c.bf16 %v411, %v411
      %v425 = vpack.c.bf16 %v414, %v414
      %v426 = vpack.c.bf16 %v417, %v417
      %428 = vrot.lane.b32.xlu0 %v365, 120
      %v429 = vpop.permute.xlu0 %428
      %431 = vrot.lane.b32.xlu0 %v365, 112
      %v432 = vpop.permute.xlu0 %431
      %434 = vrot.lane.b32.xlu0 %v365, 104
      %v435 = vpop.permute.xlu0 %434
      %438 = vrot.lane.b32.xlu0 %v368, 120
      %v439 = vpop.permute.xlu0 %438
      %441 = vrot.lane.b32.xlu0 %v368, 112
      %v442 = vpop.permute.xlu0 %441
      %444 = vrot.lane.b32.xlu0 %v368, 104
      %v445 = vpop.permute.xlu0 %444
      %v447 = vpack.c.bf16 %v365, %v365
      %v448 = vpack.c.bf16 %v429, %v429
      %v449 = vpack.c.bf16 %v432, %v432
      %v450 = vpack.c.bf16 %v435, %v435
      %v451 = vpack.c.bf16 %v368, %v368
      %v452 = vpack.c.bf16 %v439, %v439
      %v453 = vpack.c.bf16 %v442, %v442
      %v454 = vpack.c.bf16 %v445, %v445
      %vm455 = vcmask 64512
      %v457 = vsel %vm455, %v391, 0
      %v460 = vsel %vm455, %v419, 0
      %462 = vmatprep.subr.bf16.mxu0 0
      %463 = vmatpush1.bf16.xpose.msra.mxu0 0
      %464 = vmatprep.subr.bf16.mxu0 0
      %465 = vmatpush1.bf16.xpose.msra.mxu0 0
      %466 = vmatprep.subr.bf16.mxu0 0
      %467 = vmatpush1.bf16.xpose.msra.mxu0 0
      %468 = vmatprep.subr.bf16.mxu0 0
      %469 = vmatpush1.bf16.xpose.msra.mxu0 0
      %470 = vmatprep.subr.bf16.mxu0 0
      %471 = vmatpush1.bf16.xpose.msra.mxu0 0
      %472 = vmatprep.subr.bf16.mxu0 0
      %473 = vmatpush1.bf16.xpose.msra.mxu0 0
      %474 = vmatprep.subr.bf16.mxu0 0
      %475 = vmatpush1.bf16.xpose.msra.mxu0 0
      %476 = vmatprep.subr.bf16.mxu0 0
      %477 = vmatpush1.bf16.xpose.msra.mxu0 %v460
      %478 = vmatprep.subr.bf16.mxu0 0
      %479 = vmatpush2.bf16.xpose.msra.mxu0 0
      %480 = vmatprep.subr.bf16.mxu0 0
      %481 = vmatpush2.bf16.xpose.msra.mxu0 0
      %482 = vmatprep.subr.bf16.mxu0 0
      %483 = vmatpush2.bf16.xpose.msra.mxu0 0
      %484 = vmatprep.subr.bf16.mxu0 0
      %485 = vmatpush2.bf16.xpose.msra.mxu0 0
      %486 = vmatprep.subr.bf16.mxu0 0
      %487 = vmatpush2.bf16.xpose.msra.mxu0 0
      %488 = vmatprep.subr.bf16.mxu0 0
      %489 = vmatpush2.bf16.xpose.msra.mxu0 0
      %490 = vmatprep.subr.bf16.mxu0 0
      %491 = vmatpush2.bf16.xpose.msra.mxu0 0
      %492 = vmatprep.subr.bf16.mxu0 0
      %493 = vmatpush2.bf16.xpose.msra.mxu0 0
      %494 = vmatprep.mubr.bf16.mxu0 0
      %495 = vmatmul.mubr.bf16.gmra.mxu0 %v457
      %v496 = vpop.f32.mrf.mxu0
      %v497 = vadd.f32 0.0, %v496
      %v498 = vpop.f32.mrf.mxu0
      %v499 = vpop.f32.mrf.mxu0
      %v500 = vpop.f32.mrf.mxu0
      %501 = vdwg.mxu0
      %v503 = vsel %vm455, %v392, 0
      %v506 = vsel %vm455, %v420, 0
      %508 = vmatprep.subr.bf16.mxu0 0
      %509 = vmatpush1.bf16.xpose.msra.mxu0 0
      %510 = vmatprep.subr.bf16.mxu0 0
      %511 = vmatpush1.bf16.xpose.msra.mxu0 0
      %512 = vmatprep.subr.bf16.mxu0 0
      %513 = vmatpush1.bf16.xpose.msra.mxu0 0
      %514 = vmatprep.subr.bf16.mxu0 0
      %515 = vmatpush1.bf16.xpose.msra.mxu0 0
      %516 = vmatprep.subr.bf16.mxu0 0
      %517 = vmatpush1.bf16.xpose.msra.mxu0 0
      %518 = vmatprep.subr.bf16.mxu0 0
      %519 = vmatpush1.bf16.xpose.msra.mxu0 0
      %520 = vmatprep.subr.bf16.mxu0 0
      %521 = vmatpush1.bf16.xpose.msra.mxu0 0
      %522 = vmatprep.subr.bf16.mxu0 0
      %523 = vmatpush1.bf16.xpose.msra.mxu0 %v506
      %524 = vmatprep.subr.bf16.mxu0 0
      %525 = vmatpush2.bf16.xpose.msra.mxu0 0
      %526 = vmatprep.subr.bf16.mxu0 0
      %527 = vmatpush2.bf16.xpose.msra.mxu0 0
      %528 = vmatprep.subr.bf16.mxu0 0
      %529 = vmatpush2.bf16.xpose.msra.mxu0 0
      %530 = vmatprep.subr.bf16.mxu0 0
      %531 = vmatpush2.bf16.xpose.msra.mxu0 0
      %532 = vmatprep.subr.bf16.mxu0 0
      %533 = vmatpush2.bf16.xpose.msra.mxu0 0
      %534 = vmatprep.subr.bf16.mxu0 0
      %535 = vmatpush2.bf16.xpose.msra.mxu0 0
      %536 = vmatprep.subr.bf16.mxu0 0
      %537 = vmatpush2.bf16.xpose.msra.mxu0 0
      %538 = vmatprep.subr.bf16.mxu0 0
      %539 = vmatpush2.bf16.xpose.msra.mxu0 0
      %540 = vmatprep.mubr.bf16.mxu0 0
      %541 = vmatmul.mubr.bf16.gmra.mxu0 %v503
      %v542 = vpop.f32.mrf.mxu0
      %v543 = vadd.f32 0.0, %v542
      %v544 = vpop.f32.mrf.mxu0
      %v545 = vpop.f32.mrf.mxu0
      %v546 = vpop.f32.mrf.mxu0
      %547 = vdwg.mxu0
      %v549 = vsel %vm455, %v393, 0
      %v552 = vsel %vm455, %v421, 0
      %554 = vmatprep.subr.bf16.mxu0 0
      %555 = vmatpush1.bf16.xpose.msra.mxu0 0
      %556 = vmatprep.subr.bf16.mxu0 0
      %557 = vmatpush1.bf16.xpose.msra.mxu0 0
      %558 = vmatprep.subr.bf16.mxu0 0
      %559 = vmatpush1.bf16.xpose.msra.mxu0 0
      %560 = vmatprep.subr.bf16.mxu0 0
      %561 = vmatpush1.bf16.xpose.msra.mxu0 0
      %562 = vmatprep.subr.bf16.mxu0 0
      %563 = vmatpush1.bf16.xpose.msra.mxu0 0
      %564 = vmatprep.subr.bf16.mxu0 0
      %565 = vmatpush1.bf16.xpose.msra.mxu0 0
      %566 = vmatprep.subr.bf16.mxu0 0
      %567 = vmatpush1.bf16.xpose.msra.mxu0 0
      %568 = vmatprep.subr.bf16.mxu0 0
      %569 = vmatpush1.bf16.xpose.msra.mxu0 %v552
      %570 = vmatprep.subr.bf16.mxu0 0
      %571 = vmatpush2.bf16.xpose.msra.mxu0 0
      %572 = vmatprep.subr.bf16.mxu0 0
      %573 = vmatpush2.bf16.xpose.msra.mxu0 0
      %574 = vmatprep.subr.bf16.mxu0 0
      %575 = vmatpush2.bf16.xpose.msra.mxu0 0
      %576 = vmatprep.subr.bf16.mxu0 0
      %577 = vmatpush2.bf16.xpose.msra.mxu0 0
      %578 = vmatprep.subr.bf16.mxu0 0
      %579 = vmatpush2.bf16.xpose.msra.mxu0 0
      %580 = vmatprep.subr.bf16.mxu0 0
      %581 = vmatpush2.bf16.xpose.msra.mxu0 0
      %582 = vmatprep.subr.bf16.mxu0 0
      %583 = vmatpush2.bf16.xpose.msra.mxu0 0
      %584 = vmatprep.subr.bf16.mxu0 0
      %585 = vmatpush2.bf16.xpose.msra.mxu0 0
      %586 = vmatprep.mubr.bf16.mxu0 0
      %587 = vmatmul.mubr.bf16.gmra.mxu0 %v549
      %v588 = vpop.f32.mrf.mxu0
      %v589 = vadd.f32 0.0, %v588
      %v590 = vpop.f32.mrf.mxu0
      %v591 = vpop.f32.mrf.mxu0
      %v592 = vpop.f32.mrf.mxu0
      %593 = vdwg.mxu0
      %v595 = vsel %vm455, %v394, 0
      %v598 = vsel %vm455, %v422, 0
      %600 = vmatprep.subr.bf16.mxu0 0
      %601 = vmatpush1.bf16.xpose.msra.mxu0 0
      %602 = vmatprep.subr.bf16.mxu0 0
      %603 = vmatpush1.bf16.xpose.msra.mxu0 0
      %604 = vmatprep.subr.bf16.mxu0 0
      %605 = vmatpush1.bf16.xpose.msra.mxu0 0
      %606 = vmatprep.subr.bf16.mxu0 0
      %607 = vmatpush1.bf16.xpose.msra.mxu0 0
      %608 = vmatprep.subr.bf16.mxu0 0
      %609 = vmatpush1.bf16.xpose.msra.mxu0 0
      %610 = vmatprep.subr.bf16.mxu0 0
      %611 = vmatpush1.bf16.xpose.msra.mxu0 0
      %612 = vmatprep.subr.bf16.mxu0 0
      %613 = vmatpush1.bf16.xpose.msra.mxu0 0
      %614 = vmatprep.subr.bf16.mxu0 0
      %615 = vmatpush1.bf16.xpose.msra.mxu0 %v598
      %616 = vmatprep.subr.bf16.mxu0 0
      %617 = vmatpush2.bf16.xpose.msra.mxu0 0
      %618 = vmatprep.subr.bf16.mxu0 0
      %619 = vmatpush2.bf16.xpose.msra.mxu0 0
      %620 = vmatprep.subr.bf16.mxu0 0
      %621 = vmatpush2.bf16.xpose.msra.mxu0 0
      %622 = vmatprep.subr.bf16.mxu0 0
      %623 = vmatpush2.bf16.xpose.msra.mxu0 0
      %624 = vmatprep.subr.bf16.mxu0 0
      %625 = vmatpush2.bf16.xpose.msra.mxu0 0
      %626 = vmatprep.subr.bf16.mxu0 0
      %627 = vmatpush2.bf16.xpose.msra.mxu0 0
      %628 = vmatprep.subr.bf16.mxu0 0
      %629 = vmatpush2.bf16.xpose.msra.mxu0 0
      %630 = vmatprep.subr.bf16.mxu0 0
      %631 = vmatpush2.bf16.xpose.msra.mxu0 0
      %632 = vmatprep.mubr.bf16.mxu0 0
      %633 = vmatmul.mubr.bf16.gmra.mxu0 %v595
      %v634 = vpop.f32.mrf.mxu0
      %v635 = vadd.f32 0.0, %v634
      %v636 = vpop.f32.mrf.mxu0
      %v637 = vpop.f32.mrf.mxu0
      %v638 = vpop.f32.mrf.mxu0
      %639 = vdwg.mxu0
      %v641 = vsel %vm455, %v395, 0
      %v644 = vsel %vm455, %v423, 0
      %646 = vmatprep.subr.bf16.mxu0 0
      %647 = vmatpush1.bf16.xpose.msra.mxu0 0
      %648 = vmatprep.subr.bf16.mxu0 0
      %649 = vmatpush1.bf16.xpose.msra.mxu0 0
      %650 = vmatprep.subr.bf16.mxu0 0
      %651 = vmatpush1.bf16.xpose.msra.mxu0 0
      %652 = vmatprep.subr.bf16.mxu0 0
      %653 = vmatpush1.bf16.xpose.msra.mxu0 0
      %654 = vmatprep.subr.bf16.mxu0 0
      %655 = vmatpush1.bf16.xpose.msra.mxu0 0
      %656 = vmatprep.subr.bf16.mxu0 0
      %657 = vmatpush1.bf16.xpose.msra.mxu0 0
      %658 = vmatprep.subr.bf16.mxu0 0
      %659 = vmatpush1.bf16.xpose.msra.mxu0 0
      %660 = vmatprep.subr.bf16.mxu0 0
      %661 = vmatpush1.bf16.xpose.msra.mxu0 %v644
      %662 = vmatprep.subr.bf16.mxu0 0
      %663 = vmatpush2.bf16.xpose.msra.mxu0 0
      %664 = vmatprep.subr.bf16.mxu0 0
      %665 = vmatpush2.bf16.xpose.msra.mxu0 0
      %666 = vmatprep.subr.bf16.mxu0 0
      %667 = vmatpush2.bf16.xpose.msra.mxu0 0
      %668 = vmatprep.subr.bf16.mxu0 0
      %669 = vmatpush2.bf16.xpose.msra.mxu0 0
      %670 = vmatprep.subr.bf16.mxu0 0
      %671 = vmatpush2.bf16.xpose.msra.mxu0 0
      %672 = vmatprep.subr.bf16.mxu0 0
      %673 = vmatpush2.bf16.xpose.msra.mxu0 0
      %674 = vmatprep.subr.bf16.mxu0 0
      %675 = vmatpush2.bf16.xpose.msra.mxu0 0
      %676 = vmatprep.subr.bf16.mxu0 0
      %677 = vmatpush2.bf16.xpose.msra.mxu0 0
      %678 = vmatprep.mubr.bf16.mxu0 0
      %679 = vmatmul.mubr.bf16.gmra.mxu0 %v641
      %v680 = vpop.f32.mrf.mxu0
      %v681 = vadd.f32 0.0, %v680
      %v682 = vpop.f32.mrf.mxu0
      %v683 = vpop.f32.mrf.mxu0
      %v684 = vpop.f32.mrf.mxu0
      %685 = vdwg.mxu0
      %v687 = vsel %vm455, %v396, 0
      %v690 = vsel %vm455, %v424, 0
      %692 = vmatprep.subr.bf16.mxu0 0
      %693 = vmatpush1.bf16.xpose.msra.mxu0 0
      %694 = vmatprep.subr.bf16.mxu0 0
      %695 = vmatpush1.bf16.xpose.msra.mxu0 0
      %696 = vmatprep.subr.bf16.mxu0 0
      %697 = vmatpush1.bf16.xpose.msra.mxu0 0
      %698 = vmatprep.subr.bf16.mxu0 0
      %699 = vmatpush1.bf16.xpose.msra.mxu0 0
      %700 = vmatprep.subr.bf16.mxu0 0
      %701 = vmatpush1.bf16.xpose.msra.mxu0 0
      %702 = vmatprep.subr.bf16.mxu0 0
      %703 = vmatpush1.bf16.xpose.msra.mxu0 0
      %704 = vmatprep.subr.bf16.mxu0 0
      %705 = vmatpush1.bf16.xpose.msra.mxu0 0
      %706 = vmatprep.subr.bf16.mxu0 0
      %707 = vmatpush1.bf16.xpose.msra.mxu0 %v690
      %708 = vmatprep.subr.bf16.mxu0 0
      %709 = vmatpush2.bf16.xpose.msra.mxu0 0
      %710 = vmatprep.subr.bf16.mxu0 0
      %711 = vmatpush2.bf16.xpose.msra.mxu0 0
      %712 = vmatprep.subr.bf16.mxu0 0
      %713 = vmatpush2.bf16.xpose.msra.mxu0 0
      %714 = vmatprep.subr.bf16.mxu0 0
      %715 = vmatpush2.bf16.xpose.msra.mxu0 0
      %716 = vmatprep.subr.bf16.mxu0 0
      %717 = vmatpush2.bf16.xpose.msra.mxu0 0
      %718 = vmatprep.subr.bf16.mxu0 0
      %719 = vmatpush2.bf16.xpose.msra.mxu0 0
      %720 = vmatprep.subr.bf16.mxu0 0
      %721 = vmatpush2.bf16.xpose.msra.mxu0 0
      %722 = vmatprep.subr.bf16.mxu0 0
      %723 = vmatpush2.bf16.xpose.msra.mxu0 0
      %724 = vmatprep.mubr.bf16.mxu0 0
      %725 = vmatmul.mubr.bf16.gmra.mxu0 %v687
      %v726 = vpop.f32.mrf.mxu0
      %v727 = vadd.f32 0.0, %v726
      %v728 = vpop.f32.mrf.mxu0
      %v729 = vpop.f32.mrf.mxu0
      %v730 = vpop.f32.mrf.mxu0
      %731 = vdwg.mxu0
      %v733 = vsel %vm455, %v397, 0
      %v736 = vsel %vm455, %v425, 0
      %738 = vmatprep.subr.bf16.mxu0 0
      %739 = vmatpush1.bf16.xpose.msra.mxu0 0
      %740 = vmatprep.subr.bf16.mxu0 0
      %741 = vmatpush1.bf16.xpose.msra.mxu0 0
      %742 = vmatprep.subr.bf16.mxu0 0
      %743 = vmatpush1.bf16.xpose.msra.mxu0 0
      %744 = vmatprep.subr.bf16.mxu0 0
      %745 = vmatpush1.bf16.xpose.msra.mxu0 0
      %746 = vmatprep.subr.bf16.mxu0 0
      %747 = vmatpush1.bf16.xpose.msra.mxu0 0
      %748 = vmatprep.subr.bf16.mxu0 0
      %749 = vmatpush1.bf16.xpose.msra.mxu0 0
      %750 = vmatprep.subr.bf16.mxu0 0
      %751 = vmatpush1.bf16.xpose.msra.mxu0 0
      %752 = vmatprep.subr.bf16.mxu0 0
      %753 = vmatpush1.bf16.xpose.msra.mxu0 %v736
      %754 = vmatprep.subr.bf16.mxu0 0
      %755 = vmatpush2.bf16.xpose.msra.mxu0 0
      %756 = vmatprep.subr.bf16.mxu0 0
      %757 = vmatpush2.bf16.xpose.msra.mxu0 0
      %758 = vmatprep.subr.bf16.mxu0 0
      %759 = vmatpush2.bf16.xpose.msra.mxu0 0
      %760 = vmatprep.subr.bf16.mxu0 0
      %761 = vmatpush2.bf16.xpose.msra.mxu0 0
      %762 = vmatprep.subr.bf16.mxu0 0
      %763 = vmatpush2.bf16.xpose.msra.mxu0 0
      %764 = vmatprep.subr.bf16.mxu0 0
      %765 = vmatpush2.bf16.xpose.msra.mxu0 0
      %766 = vmatprep.subr.bf16.mxu0 0
      %767 = vmatpush2.bf16.xpose.msra.mxu0 0
      %768 = vmatprep.subr.bf16.mxu0 0
      %769 = vmatpush2.bf16.xpose.msra.mxu0 0
      %770 = vmatprep.mubr.bf16.mxu0 0
      %771 = vmatmul.mubr.bf16.gmra.mxu0 %v733
      %v772 = vpop.f32.mrf.mxu0
      %v773 = vadd.f32 0.0, %v772
      %v774 = vpop.f32.mrf.mxu0
      %v775 = vpop.f32.mrf.mxu0
      %v776 = vpop.f32.mrf.mxu0
      %777 = vdwg.mxu0
      %v779 = vsel %vm455, %v398, 0
      %v782 = vsel %vm455, %v426, 0
      %784 = vmatprep.subr.bf16.mxu0 0
      %785 = vmatpush1.bf16.xpose.msra.mxu0 0
      %786 = vmatprep.subr.bf16.mxu0 0
      %787 = vmatpush1.bf16.xpose.msra.mxu0 0
      %788 = vmatprep.subr.bf16.mxu0 0
      %789 = vmatpush1.bf16.xpose.msra.mxu0 0
      %790 = vmatprep.subr.bf16.mxu0 0
      %791 = vmatpush1.bf16.xpose.msra.mxu0 0
      %792 = vmatprep.subr.bf16.mxu0 0
      %793 = vmatpush1.bf16.xpose.msra.mxu0 0
      %794 = vmatprep.subr.bf16.mxu0 0
      %795 = vmatpush1.bf16.xpose.msra.mxu0 0
      %796 = vmatprep.subr.bf16.mxu0 0
      %797 = vmatpush1.bf16.xpose.msra.mxu0 0
      %798 = vmatprep.subr.bf16.mxu0 0
      %799 = vmatpush1.bf16.xpose.msra.mxu0 %v782
      %800 = vmatprep.subr.bf16.mxu0 0
      %801 = vmatpush2.bf16.xpose.msra.mxu0 0
      %802 = vmatprep.subr.bf16.mxu0 0
      %803 = vmatpush2.bf16.xpose.msra.mxu0 0
      %804 = vmatprep.subr.bf16.mxu0 0
      %805 = vmatpush2.bf16.xpose.msra.mxu0 0
      %806 = vmatprep.subr.bf16.mxu0 0
      %807 = vmatpush2.bf16.xpose.msra.mxu0 0
      %808 = vmatprep.subr.bf16.mxu0 0
      %809 = vmatpush2.bf16.xpose.msra.mxu0 0
      %810 = vmatprep.subr.bf16.mxu0 0
      %811 = vmatpush2.bf16.xpose.msra.mxu0 0
      %812 = vmatprep.subr.bf16.mxu0 0
      %813 = vmatpush2.bf16.xpose.msra.mxu0 0
      %814 = vmatprep.subr.bf16.mxu0 0
      %815 = vmatpush2.bf16.xpose.msra.mxu0 0
      %816 = vmatprep.mubr.bf16.mxu0 0
      %817 = vmatmul.mubr.bf16.gmra.mxu0 %v779
      %v818 = vpop.f32.mrf.mxu0
      %v819 = vadd.f32 0.0, %v818
      %v820 = vpop.f32.mrf.mxu0
      %v821 = vpop.f32.mrf.mxu0
      %v822 = vpop.f32.mrf.mxu0
      %823 = vdwg.mxu0
      %v824 = vmul.f32 %v497, 0.35355338
      %v825 = vmul.f32 %v543, 0.35355338
      %v826 = vmul.f32 %v589, 0.35355338
      %v827 = vmul.f32 %v635, 0.35355338
      %v828 = vmul.f32 %v681, 0.35355338
      %v829 = vmul.f32 %v727, 0.35355338
      %v830 = vmul.f32 %v773, 0.35355338
      %v831 = vmul.f32 %v819, 0.35355338
      %v832 = vsel %vm455, %v824, -inf
      %833 = vmax.xlane.f32.xlu0 %v832
      %v834 = vpop.xlane.xlu0 %833
      %v835 = vsel %vm455, %v825, -inf
      %836 = vmax.xlane.f32.xlu0 %v835
      %v837 = vpop.xlane.xlu0 %836
      %v838 = vsel %vm455, %v826, -inf
      %839 = vmax.xlane.f32.xlu0 %v838
      %v840 = vpop.xlane.xlu0 %839
      %v841 = vsel %vm455, %v827, -inf
      %842 = vmax.xlane.f32.xlu0 %v841
      %v843 = vpop.xlane.xlu0 %842
      %v844 = vsel %vm455, %v828, -inf
      %845 = vmax.xlane.f32.xlu0 %v844
      %v846 = vpop.xlane.xlu0 %845
      %v847 = vsel %vm455, %v829, -inf
      %848 = vmax.xlane.f32.xlu0 %v847
      %v849 = vpop.xlane.xlu0 %848
      %v850 = vsel %vm455, %v830, -inf
      %851 = vmax.xlane.f32.xlu0 %v850
      %v852 = vpop.xlane.xlu0 %851
      %v853 = vsel %vm455, %v831, -inf
      %854 = vmax.xlane.f32.xlu0 %v853
      %v855 = vpop.xlane.xlu0 %854
      %v856 = vsub.f32 %v824, %v834
      %v857 = vsub.f32 %v825, %v837
      %v858 = vsub.f32 %v826, %v840
      %v859 = vsub.f32 %v827, %v843
      %v860 = vsub.f32 %v828, %v846
      %v861 = vsub.f32 %v829, %v849
      %v862 = vsub.f32 %v830, %v852
      %v863 = vsub.f32 %v831, %v855
      %v864 = vmul.f32 %v856, 1.442695
      %v865 = vpow.pop %v864
      %v866 = vmul.f32 %v857, 1.442695
      %v867 = vpow.pop %v866
      %v868 = vmul.f32 %v858, 1.442695
      %v869 = vpow.pop %v868
      %v870 = vmul.f32 %v859, 1.442695
      %v871 = vpow.pop %v870
      %v872 = vmul.f32 %v860, 1.442695
      %v873 = vpow.pop %v872
      %v874 = vmul.f32 %v861, 1.442695
      %v875 = vpow.pop %v874
      %v876 = vmul.f32 %v862, 1.442695
      %v877 = vpow.pop %v876
      %v878 = vmul.f32 %v863, 1.442695
      %v879 = vpow.pop %v878
      %v880 = vsel %vm455, %v865, 0.0
      %881 = vadd.xlane.f32.xlu0 %v880
      %v882 = vpop.xlane.xlu0 %881
      %v883 = vsel %vm455, %v867, 0.0
      %884 = vadd.xlane.f32.xlu0 %v883
      %v885 = vpop.xlane.xlu0 %884
      %v886 = vsel %vm455, %v869, 0.0
      %887 = vadd.xlane.f32.xlu0 %v886
      %v888 = vpop.xlane.xlu0 %887
      %v889 = vsel %vm455, %v871, 0.0
      %890 = vadd.xlane.f32.xlu0 %v889
      %v891 = vpop.xlane.xlu0 %890
      %v892 = vsel %vm455, %v873, 0.0
      %893 = vadd.xlane.f32.xlu0 %v892
      %v894 = vpop.xlane.xlu0 %893
      %v895 = vsel %vm455, %v875, 0.0
      %896 = vadd.xlane.f32.xlu0 %v895
      %v897 = vpop.xlane.xlu0 %896
      %v898 = vsel %vm455, %v877, 0.0
      %899 = vadd.xlane.f32.xlu0 %v898
      %v900 = vpop.xlane.xlu0 %899
      %v901 = vsel %vm455, %v879, 0.0
      %902 = vadd.xlane.f32.xlu0 %v901
      %v903 = vpop.xlane.xlu0 %902
      %v904 = vrcp.pop %v882
      %v905 = vrcp.pop %v885
      %v906 = vrcp.pop %v888
      %v907 = vrcp.pop %v891
      %v908 = vrcp.pop %v894
      %v909 = vrcp.pop %v897
      %v910 = vrcp.pop %v900
      %v911 = vrcp.pop %v903
      %v912 = vmul.f32 %v865, %v904
      %v913 = vmul.f32 %v867, %v905
      %v914 = vmul.f32 %v869, %v906
      %v915 = vmul.f32 %v871, %v907
      %v916 = vmul.f32 %v873, %v908
      %v917 = vmul.f32 %v875, %v909
      %v918 = vmul.f32 %v877, %v910
      %v919 = vmul.f32 %v879, %v911
      %v920 = vpack.c.bf16 %v912, %v912
      %v921 = vpack.c.bf16 %v913, %v913
      %v922 = vpack.c.bf16 %v914, %v914
      %v923 = vpack.c.bf16 %v915, %v915
      %v924 = vpack.c.bf16 %v916, %v916
      %v925 = vpack.c.bf16 %v917, %v917
      %v926 = vpack.c.bf16 %v918, %v918
      %v927 = vpack.c.bf16 %v919, %v919
      %v929 = vsel %vm455, %v920, 0
      %vm931 = vcmask 1043456
      %v933 = vsel %vm931, %v447, 0
      %935 = vmatprep.subr.bf16.mxu0 0
      %936 = vmatpush1.bf16.msra.mxu0 0
      %937 = vmatprep.subr.bf16.mxu0 0
      %938 = vmatpush1.bf16.msra.mxu0 0
      %939 = vmatprep.subr.bf16.mxu0 0
      %940 = vmatpush1.bf16.msra.mxu0 0
      %941 = vmatprep.subr.bf16.mxu0 0
      %942 = vmatpush1.bf16.msra.mxu0 0
      %943 = vmatprep.subr.bf16.mxu0 0
      %944 = vmatpush1.bf16.msra.mxu0 0
      %945 = vmatprep.subr.bf16.mxu0 0
      %946 = vmatpush1.bf16.msra.mxu0 0
      %947 = vmatprep.subr.bf16.mxu0 0
      %948 = vmatpush1.bf16.msra.mxu0 0
      %949 = vmatprep.subr.bf16.mxu0 0
      %950 = vmatpush1.bf16.msra.mxu0 %v933
      %951 = vmatprep.subr.bf16.mxu0 0
      %952 = vmatpush2.bf16.msra.mxu0 0
      %953 = vmatprep.subr.bf16.mxu0 0
      %954 = vmatpush2.bf16.msra.mxu0 0
      %955 = vmatprep.subr.bf16.mxu0 0
      %956 = vmatpush2.bf16.msra.mxu0 0
      %957 = vmatprep.subr.bf16.mxu0 0
      %958 = vmatpush2.bf16.msra.mxu0 0
      %959 = vmatprep.subr.bf16.mxu0 0
      %960 = vmatpush2.bf16.msra.mxu0 0
      %961 = vmatprep.subr.bf16.mxu0 0
      %962 = vmatpush2.bf16.msra.mxu0 0
      %963 = vmatprep.subr.bf16.mxu0 0
      %964 = vmatpush2.bf16.msra.mxu0 0
      %965 = vmatprep.subr.bf16.mxu0 0
      %966 = vmatpush2.bf16.msra.mxu0 0
      %967 = vmatprep.mubr.bf16.mxu0 0
      %968 = vmatmul.mubr.bf16.gmra.mxu0 %v929
      %v969 = vpop.f32.mrf.mxu0
      %v970 = vadd.f32 0.0, %v969
      %v971 = vpop.f32.mrf.mxu0
      %v972 = vpop.f32.mrf.mxu0
      %v973 = vpop.f32.mrf.mxu0
      %974 = vdwg.mxu0
      %v976 = vsel %vm455, %v921, 0
      %v979 = vsel %vm931, %v448, 0
      %981 = vmatprep.subr.bf16.mxu0 0
      %982 = vmatpush1.bf16.msra.mxu0 0
      %983 = vmatprep.subr.bf16.mxu0 0
      %984 = vmatpush1.bf16.msra.mxu0 0
      %985 = vmatprep.subr.bf16.mxu0 0
      %986 = vmatpush1.bf16.msra.mxu0 0
      %987 = vmatprep.subr.bf16.mxu0 0
      %988 = vmatpush1.bf16.msra.mxu0 0
      %989 = vmatprep.subr.bf16.mxu0 0
      %990 = vmatpush1.bf16.msra.mxu0 0
      %991 = vmatprep.subr.bf16.mxu0 0
      %992 = vmatpush1.bf16.msra.mxu0 0
      %993 = vmatprep.subr.bf16.mxu0 0
      %994 = vmatpush1.bf16.msra.mxu0 0
      %995 = vmatprep.subr.bf16.mxu0 0
      %996 = vmatpush1.bf16.msra.mxu0 %v979
      %997 = vmatprep.subr.bf16.mxu0 0
      %998 = vmatpush2.bf16.msra.mxu0 0
      %999 = vmatprep.subr.bf16.mxu0 0
      %1000 = vmatpush2.bf16.msra.mxu0 0
      %1001 = vmatprep.subr.bf16.mxu0 0
      %1002 = vmatpush2.bf16.msra.mxu0 0
      %1003 = vmatprep.subr.bf16.mxu0 0
      %1004 = vmatpush2.bf16.msra.mxu0 0
      %1005 = vmatprep.subr.bf16.mxu0 0
      %1006 = vmatpush2.bf16.msra.mxu0 0
      %1007 = vmatprep.subr.bf16.mxu0 0
      %1008 = vmatpush2.bf16.msra.mxu0 0
      %1009 = vmatprep.subr.bf16.mxu0 0
      %1010 = vmatpush2.bf16.msra.mxu0 0
      %1011 = vmatprep.subr.bf16.mxu0 0
      %1012 = vmatpush2.bf16.msra.mxu0 0
      %1013 = vmatprep.mubr.bf16.mxu0 0
      %1014 = vmatmul.mubr.bf16.gmra.mxu0 %v976
      %v1015 = vpop.f32.mrf.mxu0
      %v1016 = vadd.f32 0.0, %v1015
      %v1017 = vpop.f32.mrf.mxu0
      %v1018 = vpop.f32.mrf.mxu0
      %v1019 = vpop.f32.mrf.mxu0
      %1020 = vdwg.mxu0
      %v1022 = vsel %vm455, %v922, 0
      %v1025 = vsel %vm931, %v449, 0
      %1027 = vmatprep.subr.bf16.mxu0 0
      %1028 = vmatpush1.bf16.msra.mxu0 0
      %1029 = vmatprep.subr.bf16.mxu0 0
      %1030 = vmatpush1.bf16.msra.mxu0 0
      %1031 = vmatprep.subr.bf16.mxu0 0
      %1032 = vmatpush1.bf16.msra.mxu0 0
      %1033 = vmatprep.subr.bf16.mxu0 0
      %1034 = vmatpush1.bf16.msra.mxu0 0
      %1035 = vmatprep.subr.bf16.mxu0 0
      %1036 = vmatpush1.bf16.msra.mxu0 0
      %1037 = vmatprep.subr.bf16.mxu0 0
      %1038 = vmatpush1.bf16.msra.mxu0 0
      %1039 = vmatprep.subr.bf16.mxu0 0
      %1040 = vmatpush1.bf16.msra.mxu0 0
      %1041 = vmatprep.subr.bf16.mxu0 0
      %1042 = vmatpush1.bf16.msra.mxu0 %v1025
      %1043 = vmatprep.subr.bf16.mxu0 0
      %1044 = vmatpush2.bf16.msra.mxu0 0
      %1045 = vmatprep.subr.bf16.mxu0 0
      %1046 = vmatpush2.bf16.msra.mxu0 0
      %1047 = vmatprep.subr.bf16.mxu0 0
      %1048 = vmatpush2.bf16.msra.mxu0 0
      %1049 = vmatprep.subr.bf16.mxu0 0
      %1050 = vmatpush2.bf16.msra.mxu0 0
      %1051 = vmatprep.subr.bf16.mxu0 0
      %1052 = vmatpush2.bf16.msra.mxu0 0
      %1053 = vmatprep.subr.bf16.mxu0 0
      %1054 = vmatpush2.bf16.msra.mxu0 0
      %1055 = vmatprep.subr.bf16.mxu0 0
      %1056 = vmatpush2.bf16.msra.mxu0 0
      %1057 = vmatprep.subr.bf16.mxu0 0
      %1058 = vmatpush2.bf16.msra.mxu0 0
      %1059 = vmatprep.mubr.bf16.mxu0 0
      %1060 = vmatmul.mubr.bf16.gmra.mxu0 %v1022
      %v1061 = vpop.f32.mrf.mxu0
      %v1062 = vadd.f32 0.0, %v1061
      %v1063 = vpop.f32.mrf.mxu0
      %v1064 = vpop.f32.mrf.mxu0
      %v1065 = vpop.f32.mrf.mxu0
      %1066 = vdwg.mxu0
      %v1068 = vsel %vm455, %v923, 0
      %v1071 = vsel %vm931, %v450, 0
      %1073 = vmatprep.subr.bf16.mxu0 0
      %1074 = vmatpush1.bf16.msra.mxu0 0
      %1075 = vmatprep.subr.bf16.mxu0 0
      %1076 = vmatpush1.bf16.msra.mxu0 0
      %1077 = vmatprep.subr.bf16.mxu0 0
      %1078 = vmatpush1.bf16.msra.mxu0 0
      %1079 = vmatprep.subr.bf16.mxu0 0
      %1080 = vmatpush1.bf16.msra.mxu0 0
      %1081 = vmatprep.subr.bf16.mxu0 0
      %1082 = vmatpush1.bf16.msra.mxu0 0
      %1083 = vmatprep.subr.bf16.mxu0 0
      %1084 = vmatpush1.bf16.msra.mxu0 0
      %1085 = vmatprep.subr.bf16.mxu0 0
      %1086 = vmatpush1.bf16.msra.mxu0 0
      %1087 = vmatprep.subr.bf16.mxu0 0
      %1088 = vmatpush1.bf16.msra.mxu0 %v1071
      %1089 = vmatprep.subr.bf16.mxu0 0
      %1090 = vmatpush2.bf16.msra.mxu0 0
      %1091 = vmatprep.subr.bf16.mxu0 0
      %1092 = vmatpush2.bf16.msra.mxu0 0
      %1093 = vmatprep.subr.bf16.mxu0 0
      %1094 = vmatpush2.bf16.msra.mxu0 0
      %1095 = vmatprep.subr.bf16.mxu0 0
      %1096 = vmatpush2.bf16.msra.mxu0 0
      %1097 = vmatprep.subr.bf16.mxu0 0
      %1098 = vmatpush2.bf16.msra.mxu0 0
      %1099 = vmatprep.subr.bf16.mxu0 0
      %1100 = vmatpush2.bf16.msra.mxu0 0
      %1101 = vmatprep.subr.bf16.mxu0 0
      %1102 = vmatpush2.bf16.msra.mxu0 0
      %1103 = vmatprep.subr.bf16.mxu0 0
      %1104 = vmatpush2.bf16.msra.mxu0 0
      %1105 = vmatprep.mubr.bf16.mxu0 0
      %1106 = vmatmul.mubr.bf16.gmra.mxu0 %v1068
      %v1107 = vpop.f32.mrf.mxu0
      %v1108 = vadd.f32 0.0, %v1107
      %v1109 = vpop.f32.mrf.mxu0
      %v1110 = vpop.f32.mrf.mxu0
      %v1111 = vpop.f32.mrf.mxu0
      %1112 = vdwg.mxu0
      %v1114 = vsel %vm455, %v924, 0
      %v1117 = vsel %vm931, %v451, 0
      %1119 = vmatprep.subr.bf16.mxu0 0
      %1120 = vmatpush1.bf16.msra.mxu0 0
      %1121 = vmatprep.subr.bf16.mxu0 0
      %1122 = vmatpush1.bf16.msra.mxu0 0
      %1123 = vmatprep.subr.bf16.mxu0 0
      %1124 = vmatpush1.bf16.msra.mxu0 0
      %1125 = vmatprep.subr.bf16.mxu0 0
      %1126 = vmatpush1.bf16.msra.mxu0 0
      %1127 = vmatprep.subr.bf16.mxu0 0
      %1128 = vmatpush1.bf16.msra.mxu0 0
      %1129 = vmatprep.subr.bf16.mxu0 0
      %1130 = vmatpush1.bf16.msra.mxu0 0
      %1131 = vmatprep.subr.bf16.mxu0 0
      %1132 = vmatpush1.bf16.msra.mxu0 0
      %1133 = vmatprep.subr.bf16.mxu0 0
      %1134 = vmatpush1.bf16.msra.mxu0 %v1117
      %1135 = vmatprep.subr.bf16.mxu0 0
      %1136 = vmatpush2.bf16.msra.mxu0 0
      %1137 = vmatprep.subr.bf16.mxu0 0
      %1138 = vmatpush2.bf16.msra.mxu0 0
      %1139 = vmatprep.subr.bf16.mxu0 0
      %1140 = vmatpush2.bf16.msra.mxu0 0
      %1141 = vmatprep.subr.bf16.mxu0 0
      %1142 = vmatpush2.bf16.msra.mxu0 0
      %1143 = vmatprep.subr.bf16.mxu0 0
      %1144 = vmatpush2.bf16.msra.mxu0 0
      %1145 = vmatprep.subr.bf16.mxu0 0
      %1146 = vmatpush2.bf16.msra.mxu0 0
      %1147 = vmatprep.subr.bf16.mxu0 0
      %1148 = vmatpush2.bf16.msra.mxu0 0
      %1149 = vmatprep.subr.bf16.mxu0 0
      %1150 = vmatpush2.bf16.msra.mxu0 0
      %1151 = vmatprep.mubr.bf16.mxu0 0
      %1152 = vmatmul.mubr.bf16.gmra.mxu0 %v1114
      %v1153 = vpop.f32.mrf.mxu0
      %v1154 = vadd.f32 0.0, %v1153
      %v1155 = vpop.f32.mrf.mxu0
      %v1156 = vpop.f32.mrf.mxu0
      %v1157 = vpop.f32.mrf.mxu0
      %1158 = vdwg.mxu0
      %v1160 = vsel %vm455, %v925, 0
      %v1163 = vsel %vm931, %v452, 0
      %1165 = vmatprep.subr.bf16.mxu0 0
      %1166 = vmatpush1.bf16.msra.mxu0 0
      %1167 = vmatprep.subr.bf16.mxu0 0
      %1168 = vmatpush1.bf16.msra.mxu0 0
      %1169 = vmatprep.subr.bf16.mxu0 0
      %1170 = vmatpush1.bf16.msra.mxu0 0
      %1171 = vmatprep.subr.bf16.mxu0 0
      %1172 = vmatpush1.bf16.msra.mxu0 0
      %1173 = vmatprep.subr.bf16.mxu0 0
      %1174 = vmatpush1.bf16.msra.mxu0 0
      %1175 = vmatprep.subr.bf16.mxu0 0
      %1176 = vmatpush1.bf16.msra.mxu0 0
      %1177 = vmatprep.subr.bf16.mxu0 0
      %1178 = vmatpush1.bf16.msra.mxu0 0
      %1179 = vmatprep.subr.bf16.mxu0 0
      %1180 = vmatpush1.bf16.msra.mxu0 %v1163
      %1181 = vmatprep.subr.bf16.mxu0 0
      %1182 = vmatpush2.bf16.msra.mxu0 0
      %1183 = vmatprep.subr.bf16.mxu0 0
      %1184 = vmatpush2.bf16.msra.mxu0 0
      %1185 = vmatprep.subr.bf16.mxu0 0
      %1186 = vmatpush2.bf16.msra.mxu0 0
      %1187 = vmatprep.subr.bf16.mxu0 0
      %1188 = vmatpush2.bf16.msra.mxu0 0
      %1189 = vmatprep.subr.bf16.mxu0 0
      %1190 = vmatpush2.bf16.msra.mxu0 0
      %1191 = vmatprep.subr.bf16.mxu0 0
      %1192 = vmatpush2.bf16.msra.mxu0 0
      %1193 = vmatprep.subr.bf16.mxu0 0
      %1194 = vmatpush2.bf16.msra.mxu0 0
      %1195 = vmatprep.subr.bf16.mxu0 0
      %1196 = vmatpush2.bf16.msra.mxu0 0
      %1197 = vmatprep.mubr.bf16.mxu0 0
      %1198 = vmatmul.mubr.bf16.gmra.mxu0 %v1160
      %v1199 = vpop.f32.mrf.mxu0
      %v1200 = vadd.f32 0.0, %v1199
      %v1201 = vpop.f32.mrf.mxu0
      %v1202 = vpop.f32.mrf.mxu0
      %v1203 = vpop.f32.mrf.mxu0
      %1204 = vdwg.mxu0
      %v1206 = vsel %vm455, %v926, 0
      %v1209 = vsel %vm931, %v453, 0
      %1211 = vmatprep.subr.bf16.mxu0 0
      %1212 = vmatpush1.bf16.msra.mxu0 0
      %1213 = vmatprep.subr.bf16.mxu0 0
      %1214 = vmatpush1.bf16.msra.mxu0 0
      %1215 = vmatprep.subr.bf16.mxu0 0
      %1216 = vmatpush1.bf16.msra.mxu0 0
      %1217 = vmatprep.subr.bf16.mxu0 0
      %1218 = vmatpush1.bf16.msra.mxu0 0
      %1219 = vmatprep.subr.bf16.mxu0 0
      %1220 = vmatpush1.bf16.msra.mxu0 0
      %1221 = vmatprep.subr.bf16.mxu0 0
      %1222 = vmatpush1.bf16.msra.mxu0 0
      %1223 = vmatprep.subr.bf16.mxu0 0
      %1224 = vmatpush1.bf16.msra.mxu0 0
      %1225 = vmatprep.subr.bf16.mxu0 0
      %1226 = vmatpush1.bf16.msra.mxu0 %v1209
      %1227 = vmatprep.subr.bf16.mxu0 0
      %1228 = vmatpush2.bf16.msra.mxu0 0
      %1229 = vmatprep.subr.bf16.mxu0 0
      %1230 = vmatpush2.bf16.msra.mxu0 0
      %1231 = vmatprep.subr.bf16.mxu0 0
      %1232 = vmatpush2.bf16.msra.mxu0 0
      %1233 = vmatprep.subr.bf16.mxu0 0
      %1234 = vmatpush2.bf16.msra.mxu0 0
      %1235 = vmatprep.subr.bf16.mxu0 0
      %1236 = vmatpush2.bf16.msra.mxu0 0
      %1237 = vmatprep.subr.bf16.mxu0 0
      %1238 = vmatpush2.bf16.msra.mxu0 0
      %1239 = vmatprep.subr.bf16.mxu0 0
      %1240 = vmatpush2.bf16.msra.mxu0 0
      %1241 = vmatprep.subr.bf16.mxu0 0
      %1242 = vmatpush2.bf16.msra.mxu0 0
      %1243 = vmatprep.mubr.bf16.mxu0 0
      %1244 = vmatmul.mubr.bf16.gmra.mxu0 %v1206
      %v1245 = vpop.f32.mrf.mxu0
      %v1246 = vadd.f32 0.0, %v1245
      %v1247 = vpop.f32.mrf.mxu0
      %v1248 = vpop.f32.mrf.mxu0
      %v1249 = vpop.f32.mrf.mxu0
      %1250 = vdwg.mxu0
      %v1252 = vsel %vm455, %v927, 0
      %v1255 = vsel %vm931, %v454, 0
      %1257 = vmatprep.subr.bf16.mxu0 0
      %1258 = vmatpush1.bf16.msra.mxu0 0
      %1259 = vmatprep.subr.bf16.mxu0 0
      %1260 = vmatpush1.bf16.msra.mxu0 0
      %1261 = vmatprep.subr.bf16.mxu0 0
      %1262 = vmatpush1.bf16.msra.mxu0 0
      %1263 = vmatprep.subr.bf16.mxu0 0
      %1264 = vmatpush1.bf16.msra.mxu0 0
      %1265 = vmatprep.subr.bf16.mxu0 0
      %1266 = vmatpush1.bf16.msra.mxu0 0
      %1267 = vmatprep.subr.bf16.mxu0 0
      %1268 = vmatpush1.bf16.msra.mxu0 0
      %1269 = vmatprep.subr.bf16.mxu0 0
      %1270 = vmatpush1.bf16.msra.mxu0 0
      %1271 = vmatprep.subr.bf16.mxu0 0
      %1272 = vmatpush1.bf16.msra.mxu0 %v1255
      %1273 = vmatprep.subr.bf16.mxu0 0
      %1274 = vmatpush2.bf16.msra.mxu0 0
      %1275 = vmatprep.subr.bf16.mxu0 0
      %1276 = vmatpush2.bf16.msra.mxu0 0
      %1277 = vmatprep.subr.bf16.mxu0 0
      %1278 = vmatpush2.bf16.msra.mxu0 0
      %1279 = vmatprep.subr.bf16.mxu0 0
      %1280 = vmatpush2.bf16.msra.mxu0 0
      %1281 = vmatprep.subr.bf16.mxu0 0
      %1282 = vmatpush2.bf16.msra.mxu0 0
      %1283 = vmatprep.subr.bf16.mxu0 0
      %1284 = vmatpush2.bf16.msra.mxu0 0
      %1285 = vmatprep.subr.bf16.mxu0 0
      %1286 = vmatpush2.bf16.msra.mxu0 0
      %1287 = vmatprep.subr.bf16.mxu0 0
      %1288 = vmatpush2.bf16.msra.mxu0 0
      %1289 = vmatprep.mubr.bf16.mxu0 0
      %1290 = vmatmul.mubr.bf16.gmra.mxu0 %v1252
      %v1291 = vpop.f32.mrf.mxu0
      %v1292 = vadd.f32 0.0, %v1291
      %v1293 = vpop.f32.mrf.mxu0
      %v1294 = vpop.f32.mrf.mxu0
      %v1295 = vpop.f32.mrf.mxu0
      %1296 = vdwg.mxu0
      %1298 = vrot.lane.b32.xlu0 %v1016, 8
      %v1299 = vpop.permute.xlu0 %1298
      %1302 = vrot.lane.b32.xlu0 %v1062, 16
      %v1303 = vpop.permute.xlu0 %1302
      %1306 = vrot.lane.b32.xlu0 %v1108, 24
      %v1307 = vpop.permute.xlu0 %1306
      %v1309 = vsel %vm455, %v970, %v1299
      %vm1310 = vcmask 130048
      %v1311 = vsel %vm1310, %v1309, %v1303
      %vm1312 = vcmask 195584
      %v1313 = vsel %vm1312, %v1311, %v1307
      %1315 = vrot.lane.b32.xlu0 %v1200, 8
      %v1316 = vpop.permute.xlu0 %1315
      %1319 = vrot.lane.b32.xlu0 %v1246, 16
      %v1320 = vpop.permute.xlu0 %1319
      %1323 = vrot.lane.b32.xlu0 %v1292, 24
      %v1324 = vpop.permute.xlu0 %1323
      %v1326 = vsel %vm455, %v1154, %v1316
      %v1327 = vsel %vm1310, %v1326, %v1320
      %v1328 = vsel %vm1312, %v1327, %v1324
      %v1329 = vpack.c.bf16 %v1328, %v1313
      %v1334 = vunpack.c.l.b16 %v113
      %v1335 = vunpack.c.l.b16 %v114
      %v1336 = vunpack.c.l.b16 %v115
      %v1337 = vunpack.c.l.b16 %v116
      %v1338 = vpack.c.b16 %v1335, %v1334
      %v1339 = vpack.c.b16 %v1337, %v1336
      %v1343 = vsel %vm220, %v1329, 0
      %1345 = vmatprep.subr.bf16.mxu0 0
      %1346 = vmatpush1.bf16.msra.mxu0 0
      %1347 = vmatprep.subr.bf16.mxu0 0
      %1348 = vmatpush1.bf16.msra.mxu0 0
      %1349 = vmatprep.subr.bf16.mxu0 0
      %1350 = vmatpush1.bf16.msra.mxu0 0
      %1351 = vmatprep.subr.bf16.mxu0 0
      %1352 = vmatpush1.bf16.msra.mxu0 0
      %1353 = vmatprep.subr.bf16.mxu0 0
      %1354 = vmatpush1.bf16.msra.mxu0 0
      %1355 = vmatprep.subr.bf16.mxu0 0
      %1356 = vmatpush1.bf16.msra.mxu0 0
      %1357 = vmatprep.subr.bf16.mxu0 0
      %1358 = vmatpush1.bf16.msra.mxu0 %v1339
      %1359 = vmatprep.subr.bf16.mxu0 0
      %1360 = vmatpush1.bf16.msra.mxu0 %v1338
      %1361 = vmatprep.subr.bf16.mxu0 0
      %1362 = vmatpush2.bf16.msra.mxu0 0
      %1363 = vmatprep.subr.bf16.mxu0 0
      %1364 = vmatpush2.bf16.msra.mxu0 0
      %1365 = vmatprep.subr.bf16.mxu0 0
      %1366 = vmatpush2.bf16.msra.mxu0 0
      %1367 = vmatprep.subr.bf16.mxu0 0
      %1368 = vmatpush2.bf16.msra.mxu0 0
      %1369 = vmatprep.subr.bf16.mxu0 0
      %1370 = vmatpush2.bf16.msra.mxu0 0
      %1371 = vmatprep.subr.bf16.mxu0 0
      %1372 = vmatpush2.bf16.msra.mxu0 0
      %1373 = vmatprep.subr.bf16.mxu0 0
      %1374 = vmatpush2.bf16.msra.mxu0 0
      %1375 = vmatprep.subr.bf16.mxu0 0
      %1376 = vmatpush2.bf16.msra.mxu0 0
      %1377 = vmatprep.mubr.bf16.mxu0 0
      %1378 = vmatmul.mubr.bf16.gmra.mxu0 %v1343
      %v1379 = vpop.f32.mrf.mxu0
      %v1380 = vadd.f32 %v155, %v1379
      %v1381 = vpop.f32.mrf.mxu0
      %v1382 = vpop.f32.mrf.mxu0
      %v1383 = vadd.f32 %v155, %v1382
      %v1384 = vpop.f32.mrf.mxu0
      %1385 = vdwg.mxu0
      %v1386 = vadd.f32 %v205, %v1380
      %v1387 = vadd.f32 %v206, %v1383
      %v1388 = vsel %vm220, %v1386, 0.0
      %1389 = vadd.xlane.f32.xlu0 %v1388
      %v1390 = vpop.xlane.xlu0 %1389
      %v1391 = vsel %vm220, %v1387, 0.0
      %1392 = vadd.xlane.f32.xlu0 %v1391
      %v1393 = vpop.xlane.xlu0 %1392
      %v1394 = vrcp.pop 32.0
      %v1395 = vmul.f32 %v1390, %v1394
      %v1396 = vmul.f32 %v1393, %v1394
      %v1397 = vsub.f32 %v1386, %v1395
      %v1398 = vsub.f32 %v1387, %v1396
      %v1399 = vmul.f32 %v1397, %v1397
      %v1400 = vmul.f32 %v1398, %v1398
      %v1401 = vsel %vm220, %v1399, 0.0
      %1402 = vadd.xlane.f32.xlu0 %v1401
      %v1403 = vpop.xlane.xlu0 %1402
      %v1404 = vsel %vm220, %v1400, 0.0
      %1405 = vadd.xlane.f32.xlu0 %v1404
      %v1406 = vpop.xlane.xlu0 %1405
      %v1407 = vmul.f32 %v1403, %v1394
      %v1408 = vmul.f32 %v1406, %v1394
      %v1409 = vadd.f32 %v1407, 1e-05
      %v1410 = vadd.f32 %v1408, 1e-05
      %v1411 = vrsqrt.pop %v1409
      %v1412 = vrsqrt.pop %v1410
      %v1413 = vmul.f32 %v1397, %v1411
      %v1414 = vmul.f32 %v1398, %v1412
      %v1415 = vmul.f32 %v1413, %v176
      %v1416 = vmul.f32 %v1414, %v176
      %v1417 = vadd.f32 %v1415, %v183
      %v1418 = vadd.f32 %v1416, %v183
      %v1419 = vpack.c.bf16 %v1418, %v1417
      %v1424 = vunpack.c.l.b16 %v117
      %v1425 = vunpack.c.l.b16 %v118
      %v1426 = vunpack.c.l.b16 %v119
      %v1427 = vunpack.c.l.b16 %v120
      %v1428 = vpack.c.b16 %v1425, %v1424
      %v1429 = vpack.c.b16 %v1427, %v1426
      %v1433 = vsel %vm220, %v1419, 0
      %1435 = vmatprep.subr.bf16.mxu0 0
      %1436 = vmatpush1.bf16.msra.mxu0 0
      %1437 = vmatprep.subr.bf16.mxu0 0
      %1438 = vmatpush1.bf16.msra.mxu0 0
      %1439 = vmatprep.subr.bf16.mxu0 0
      %1440 = vmatpush1.bf16.msra.mxu0 0
      %1441 = vmatprep.subr.bf16.mxu0 0
      %1442 = vmatpush1.bf16.msra.mxu0 0
      %1443 = vmatprep.subr.bf16.mxu0 0
      %1444 = vmatpush1.bf16.msra.mxu0 0
      %1445 = vmatprep.subr.bf16.mxu0 0
      %1446 = vmatpush1.bf16.msra.mxu0 0
      %1447 = vmatprep.subr.bf16.mxu0 0
      %1448 = vmatpush1.bf16.msra.mxu0 %v1429
      %1449 = vmatprep.subr.bf16.mxu0 0
      %1450 = vmatpush1.bf16.msra.mxu0 %v1428
      %1451 = vmatprep.subr.bf16.mxu0 0
      %1452 = vmatpush2.bf16.msra.mxu0 0
      %1453 = vmatprep.subr.bf16.mxu0 0
      %1454 = vmatpush2.bf16.msra.mxu0 0
      %1455 = vmatprep.subr.bf16.mxu0 0
      %1456 = vmatpush2.bf16.msra.mxu0 0
      %1457 = vmatprep.subr.bf16.mxu0 0
      %1458 = vmatpush2.bf16.msra.mxu0 0
      %1459 = vmatprep.subr.bf16.mxu0 0
      %1460 = vmatpush2.bf16.msra.mxu0 0
      %1461 = vmatprep.subr.bf16.mxu0 0
      %1462 = vmatpush2.bf16.msra.mxu0 0
      %1463 = vmatprep.subr.bf16.mxu0 0
      %1464 = vmatpush2.bf16.msra.mxu0 0
      %1465 = vmatprep.subr.bf16.mxu0 0
      %1466 = vmatpush2.bf16.msra.mxu0 0
      %1467 = vmatprep.mubr.bf16.mxu0 0
      %1468 = vmatmul.mubr.bf16.gmra.mxu0 %v1433
      %v1469 = vpop.f32.mrf.mxu0
      %v1470 = vadd.f32 %v162, %v1469
      %v1471 = vpop.f32.mrf.mxu0
      %v1472 = vpop.f32.mrf.mxu0
      %v1473 = vadd.f32 %v162, %v1472
      %v1474 = vpop.f32.mrf.mxu0
      %1475 = vdwg.mxu0
      %v1476 = vmax.f32 %v1470, 0.0
      %v1477 = vmax.f32 %v1473, 0.0
      %v1478 = vpack.c.bf16 %v1477, %v1476
      %v1487 = vunpack.c.l.b16 %v121
      %v1488 = vunpack.c.l.b16 %v122
      %v1489 = vunpack.c.l.b16 %v123
      %v1490 = vunpack.c.l.b16 %v124
      %v1491 = vunpack.c.l.b16 %v125
      %v1492 = vunpack.c.l.b16 %v126
      %v1493 = vunpack.c.l.b16 %v127
      %v1494 = vunpack.c.l.b16 %v128
      %v1495 = vpack.c.b16 %v1488, %v1487
      %v1496 = vpack.c.b16 %v1490, %v1489
      %v1497 = vpack.c.b16 %v1492, %v1491
      %v1498 = vpack.c.b16 %v1494, %v1493
      %vm1503 = vcmask 523264
      %v1505 = vsel %vm1503, %v1478, 0
      %1507 = vmatprep.subr.bf16.mxu0 0
      %1508 = vmatpush1.bf16.msra.mxu0 0
      %1509 = vmatprep.subr.bf16.mxu0 0
      %1510 = vmatpush1.bf16.msra.mxu0 0
      %1511 = vmatprep.subr.bf16.mxu0 0
      %1512 = vmatpush1.bf16.msra.mxu0 0
      %1513 = vmatprep.subr.bf16.mxu0 0
      %1514 = vmatpush1.bf16.msra.mxu0 0
      %1515 = vmatprep.subr.bf16.mxu0 0
      %1516 = vmatpush1.bf16.msra.mxu0 %v1498
      %1517 = vmatprep.subr.bf16.mxu0 0
      %1518 = vmatpush1.bf16.msra.mxu0 %v1497
      %1519 = vmatprep.subr.bf16.mxu0 0
      %1520 = vmatpush1.bf16.msra.mxu0 %v1496
      %1521 = vmatprep.subr.bf16.mxu0 0
      %1522 = vmatpush1.bf16.msra.mxu0 %v1495
      %1523 = vmatprep.subr.bf16.mxu0 0
      %1524 = vmatpush2.bf16.msra.mxu0 0
      %1525 = vmatprep.subr.bf16.mxu0 0
      %1526 = vmatpush2.bf16.msra.mxu0 0
      %1527 = vmatprep.subr.bf16.mxu0 0
      %1528 = vmatpush2.bf16.msra.mxu0 0
      %1529 = vmatprep.subr.bf16.mxu0 0
      %1530 = vmatpush2.bf16.msra.mxu0 0
      %1531 = vmatprep.subr.bf16.mxu0 0
      %1532 = vmatpush2.bf16.msra.mxu0 0
      %1533 = vmatprep.subr.bf16.mxu0 0
      %1534 = vmatpush2.bf16.msra.mxu0 0
      %1535 = vmatprep.subr.bf16.mxu0 0
      %1536 = vmatpush2.bf16.msra.mxu0 0
      %1537 = vmatprep.subr.bf16.mxu0 0
      %1538 = vmatpush2.bf16.msra.mxu0 0
      %1539 = vmatprep.mubr.bf16.mxu0 0
      %1540 = vmatmul.mubr.bf16.gmra.mxu0 %v1505
      %v1541 = vpop.f32.mrf.mxu0
      %v1542 = vadd.f32 %v169, %v1541
      %v1543 = vpop.f32.mrf.mxu0
      %v1544 = vpop.f32.mrf.mxu0
      %v1545 = vadd.f32 %v169, %v1544
      %v1546 = vpop.f32.mrf.mxu0
      %1547 = vdwg.mxu0
      %v1548 = vadd.f32 %v1417, %v1542
      %v1549 = vadd.f32 %v1418, %v1545
      %v1550 = vsel %vm220, %v1548, 0.0
      %1551 = vadd.xlane.f32.xlu0 %v1550
      %v1552 = vpop.xlane.xlu0 %1551
      %v1553 = vsel %vm220, %v1549, 0.0
      %1554 = vadd.xlane.f32.xlu0 %v1553
      %v1555 = vpop.xlane.xlu0 %1554
      %v1556 = vmul.f32 %v1552, %v1394
      %v1557 = vmul.f32 %v1555, %v1394
      %v1558 = vsub.f32 %v1548, %v1556
      %v1559 = vsub.f32 %v1549, %v1557
      %v1560 = vmul.f32 %v1558, %v1558
      %v1561 = vmul.f32 %v1559, %v1559
      %v1562 = vsel %vm220, %v1560, 0.0
      %1563 = vadd.xlane.f32.xlu0 %v1562
      %v1564 = vpop.xlane.xlu0 %1563
      %v1565 = vsel %vm220, %v1561, 0.0
      %1566 = vadd.xlane.f32.xlu0 %v1565
      %v1567 = vpop.xlane.xlu0 %1566
      %v1568 = vmul.f32 %v1564, %v1394
      %v1569 = vmul.f32 %v1567, %v1394
      %v1570 = vadd.f32 %v1568, 1e-05
      %v1571 = vadd.f32 %v1569, 1e-05
      %v1572 = vrsqrt.pop %v1570
      %v1573 = vrsqrt.pop %v1571
      %v1574 = vmul.f32 %v1558, %v1572
      %v1575 = vmul.f32 %v1559, %v1573
      %v1576 = vmul.f32 %v1574, %v190
      %v1577 = vmul.f32 %v1575, %v190
      %v1578 = vadd.f32 %v1576, %v197
      %v1579 = vadd.f32 %v1577, %v197
    $region86: #{tpu_custom_call.1} parent=1 // loop_footer
      %s204 = sadd.s32 1, %s200
    $region87: #{tpu_custom_call.1} parent=1 // loop_footer_branch
      %199 = sbr.rel target = $region83
    $region88: #{tpu_custom_call.1} parent=1 // loop_exit
      _
    %vm1580 = vcmask 261120
    %1581 = vst.msk [vmem:[#allocation8] sm:$0xff] %vm1580, %v205
    %1582 = vst.msk [vmem:[#allocation8 + $0x8] sm:$0xff] %vm1580, %v206
    // Predicated region
    $region89: #{tpu_custom_call.1} parent=1 // pred_check
      _
    $region90: #{tpu_custom_call.1} parent=1 // pred_check_branch
      %1584 = sbr.rel (0) target = $region92
    $region91: #{tpu_custom_call.1} parent=1 // pred_region
      %s1586 = ssub.s32 256, 256
      %1587 = vsyncadd [#allocation4], %s1586
      %s1588 = sshll.u32 [#allocation8], 4
      %s1589 = int_to_ptr.vmem [resolvable:$true] %s1588
      %1594 = dma.vmem_to_hbm [thread:$0]  %s1589, 256, %s17, [#allocation4], 128, 128, 8
    $region92: #{tpu_custom_call.1} parent=1 // pred_fallthru
      _
    // Predicated region
    $region93: #{tpu_custom_call.1} parent=1 // pred_check
      _
    $region94: #{tpu_custom_call.1} parent=1 // pred_check_branch
      %1596 = sbr.rel (0) target = $region96
    $region95: #{tpu_custom_call.1} parent=1 // pred_region
      %1597 = dma.done [#allocation4], 256
    $region96: #{tpu_custom_call.1} parent=1 // pred_fallthru
      _
    %1598 = vsyncpa [#allocation3], 1
    %1599 = vsyncpa [#allocation6], 1
    %1600 = vsyncpa [#allocation4], 1

</llo_original>
